<compile_context>
chip_gen: v6e
topology: v6e:2x2x1
jax: 0.10.0
libtpu: 0.0.40
codegen_flags: <defaults>
</compile_context>

<pallas_src>
import functools

import jax
import jax.numpy as jnp
from jax import lax
from jax.experimental import pallas as pl
from jax.experimental.pallas import tpu as pltpu

# `Out_c` is an (undefined-in-snippet) module-level global in the original file.
OUT_C = 2


def _fusion_kernel(x1_ref, x2_ref, x3_ref,
                   w2_ref, w3lo_ref, w3hi_ref,
                   m1_ref, m2_ref, m3_ref,
                   out_ref, *, lp):
    """One grid step: R = Bb * (L//4) packed rows (4 sequence positions per row)."""
    f32 = jnp.float32
    R = out_ref.shape[0]

    # Widen bf16 activations once; all vector math stays f32 (safe on v5e's f32-only VPU).
    # The MXU truncates operands to bf16 per pass anyway (DEFAULT precision), accumulation
    # stays f32 via preferred_element_type.
    x1 = x1_ref[...].astype(f32)          # (R, 4*d1)   packed side_out1
    x2 = x2_ref[...].astype(f32)          # (R, d2)     coarse (L/4) side_out2
    x3 = x3_ref[...].astype(f32)          # (R, d3)     side_out3, x2-repeated to L/4

    # One row iota per step, reused everywhere (hoisted masks / parity).
    rows = lax.broadcasted_iota(jnp.int32, (R, 1), 0)
    pos = rows % lp                        # packed position within the batch element
    not_first = pos != 0
    not_last = pos != (lp - 1)
    odd = (rows % 2) == 1                  # lp is even, so block-local parity is exact

    # ConvTranspose2d(d2->d1, k=4, s=4): coarse matmul, result is already packed-4.
    up2 = jnp.dot(x2, w2_ref[...], preferred_element_type=f32)          # (R, 4*d1)
    # ConvTranspose2d(d3->d1, k=8, s=8): even packed rows take phases 0-3, odd take 4-7.
    up3 = jnp.where(odd,
                    jnp.dot(x3, w3hi_ref[...], preferred_element_type=f32),
                    jnp.dot(x3, w3lo_ref[...], preferred_element_type=f32))

    def taps3(x):
        # [row-1 | row | row+1] halo of whole packed rows; rolls are masked at per-batch
        # boundaries so they never leak across batch elements (matches zero padding).
        prv = jnp.where(not_first, pltpu.roll(x, shift=1, axis=0), 0.0)
        nxt = jnp.where(not_last, pltpu.roll(x, shift=R - 1, axis=0), 0.0)
        return jnp.concatenate([prv, x, nxt], axis=-1)   # pieces are 128-lane aligned

    cat = jnp.concatenate([x1, up2, up3], axis=-1)                       # (R, 12*d1)
    f1 = jnp.dot(taps3(cat), m1_ref[...], preferred_element_type=f32)    # (R, 4*ft*d1)
    f2 = jnp.dot(taps3(f1), m2_ref[...], preferred_element_type=f32)     # (R, 4*d1)
    f3 = jnp.dot(taps3(f2), m3_ref[...], preferred_element_type=f32)     # (R, 4*OUT_C)
    out_ref[...] = f3.astype(out_ref.dtype)


def _packed_conv_mats(w):
    """(1,3) conv weight (Cout, Cin, 3) -> (prev, intra, next) packed-4 block matrices.

    Each is (4*Cin, 4*Cout). Multiplying a packed activation row (4 positions x Cin lanes)
    by `intra` applies every in-row tap; `prev`/`next` apply the taps that cross into the
    previous / next packed row (the 1-position halo).
    """
    cout, cin, _ = w.shape
    taps = [jnp.transpose(w[:, :, k]) for k in range(3)]   # (Cin, Cout); offsets -1, 0, +1
    zero = jnp.zeros((cin, cout), w.dtype)
    G = 4

    def build(block):
        out_rows = []
        for g in range(G):                                  # g: input position group
            cols = [block(g, q) for q in range(G)]          # q: output position group
            out_rows.append(jnp.concatenate(cols, axis=1))
        return jnp.concatenate(out_rows, axis=0)

    intra = build(lambda g, q: taps[g - q + 1] if abs(g - q) <= 1 else zero)
    prev = build(lambda g, q: taps[0] if (g == G - 1 and q == 0) else zero)
    nxt = build(lambda g, q: taps[2] if (g == 0 and q == G - 1) else zero)
    return prev, intra, nxt


def init_params(key, d1=32, d2=32, d3=32, fusion_times=1):
    ks = jax.random.split(key, 5)

    def w(k, shape, fan_in):
        return jax.random.normal(k, shape, jnp.float32) / jnp.sqrt(jnp.float32(fan_in))

    return {
        # PyTorch native layouts
        "up2": w(ks[0], (d2, d1, 1, 4), d2 * 4),                    # ConvTranspose2d (Cin,Cout,kH,kW)
        "up3": w(ks[1], (d3, d1, 1, 8), d3 * 8),
        "fusion": w(ks[2], (fusion_times * d1, 3 * d1, 1, 3), 3 * d1 * 3),   # Conv2d (Cout,Cin,kH,kW)
        "fusion2": w(ks[3], (d1, fusion_times * d1, 1, 3), fusion_times * d1 * 3),
        "fusion3": w(ks[4], (OUT_C, d1, 1, 3), d1 * 3),
    }


def fusion_forward_pallas(side_out1, side_out2, side_out3, params, *,
                          max_rows_per_step=1024):
    B, d1, H, L = side_out1.shape
    _, d2, _, L4 = side_out2.shape
    _, d3, _, L8 = side_out3.shape
    assert H == 1 and L == 4 * L4 == 8 * L8 and L % 8 == 0
    lp = L // 4                                 # packed rows per batch element

    # ---- batch-block size: VMEM row budget + >=2 grid steps whenever B >= 2 ----------
    # (whole batch elements per step: the in-kernel halo rolls rely on that)
    step_cap = B // 2 if B >= 2 else 1
    row_cap = max(1, max_rows_per_step // lp)
    limit = max(1, min(B, step_cap, row_cap))
    cands = [b for b in range(limit, 0, -1)
             if B % b == 0 and ((b * lp) % 8 == 0 or b == B)]
    Bb = cands[0] if cands else B               # fallback: single full-batch step
    R = Bb * lp                                 # packed rows per grid step

    # ---- activations: packed-4 rows, streamed as bf16 --------------------------------
    def to_rows(x):                             # (B, C, 1, l) -> (B, l, C)
        return jnp.transpose(x[:, :, 0, :], (0, 2, 1))

    x1p = to_rows(side_out1).reshape(B * lp, 4 * d1).astype(jnp.bfloat16)
    x2p = to_rows(side_out2).reshape(B * lp, d2).astype(jnp.bfloat16)
    # x3 only needs a x2 repeat (to L/4 resolution); fully-coarse x3 would need an
    # in-kernel lane->sublane relayout, and the residual traffic is tiny (d3 bf16 / 4 rows).
    x3p = jnp.repeat(to_rows(side_out3), 2, axis=1).reshape(B * lp, d3).astype(jnp.bfloat16)

    # ---- weights (small; kept f32 so no in-kernel weight casts are needed) -----------
    # ConvTranspose (Cin, Cout, 1, k) -> (Cin, k*Cout): lane block p == output phase p.
    w2w = jnp.transpose(params["up2"][:, :, 0, :], (0, 2, 1)).reshape(d2, 4 * d1)
    w3w = jnp.transpose(params["up3"][:, :, 0, :], (0, 2, 1)).reshape(d3, 8 * d1)
    w3lo, w3hi = w3w[:, :4 * d1], w3w[:, 4 * d1:]

    # (1,3) convs -> packed [prev | intra | next] block matrices, K-stacked so each conv
    # is a single matmul against the [roll(+1) | x | roll(-1)] lane concat.
    def conv_mats(w):                           # w: (Cout, Cin, 1, 3)
        return _packed_conv_mats(w[:, :, 0, :])

    # layer 1: per input source (x1 | up2 | up3 channel blocks), rows stacked per source.
    parts = [conv_mats(params["fusion"][:, s * d1:(s + 1) * d1]) for s in range(3)]
    m1 = jnp.concatenate(
        [jnp.concatenate([p[k] for p in parts], axis=0) for k in range(3)], axis=0)
    m2 = jnp.concatenate(conv_mats(params["fusion2"]), axis=0)
    m3 = jnp.concatenate(conv_mats(params["fusion3"]), axis=0)

    grid_spec = pltpu.PrefetchScalarGridSpec(
        num_scalar_prefetch=0,
        grid=(B // Bb,),
        in_specs=[
            pl.BlockSpec((R, 4 * d1), lambda i: (i, 0)),
            pl.BlockSpec((R, d2), lambda i: (i, 0)),
            pl.BlockSpec((R, d3), lambda i: (i, 0)),
            pl.BlockSpec(w2w.shape, lambda i: (0, 0)),
            pl.BlockSpec(w3lo.shape, lambda i: (0, 0)),
            pl.BlockSpec(w3hi.shape, lambda i: (0, 0)),
            pl.BlockSpec(m1.shape, lambda i: (0, 0)),
            pl.BlockSpec(m2.shape, lambda i: (0, 0)),
            pl.BlockSpec(m3.shape, lambda i: (0, 0)),
        ],
        out_specs=pl.BlockSpec((R, 4 * OUT_C), lambda i: (i, 0)),
    )

    out = pl.pallas_call(
        functools.partial(_fusion_kernel, lp=lp),
        out_shape=jax.ShapeDtypeStruct((B * lp, 4 * OUT_C), jnp.float32),
        grid_spec=grid_spec,
        compiler_params=pltpu.CompilerParams(
            dimension_semantics=("parallel",),
            vmem_limit_bytes=32 * 1024 * 1024),
    )(x1p, x2p, x3p, w2w, w3lo, w3hi, m1, m2, m3)

    # (B*L/4, 4*OUT_C) packed rows -> (B, OUT_C, L); matches torch's view(-1, num, L).
    fuse = out.reshape(B, lp, 4, OUT_C)
    result = jnp.transpose(fuse, (0, 3, 1, 2)).reshape(B, OUT_C, L)
    if OUT_C == 1:
        result = jnp.squeeze(result, axis=1)
    return result


def fusion_forward_reference(side_out1, side_out2, side_out3, params):
    """Pure-JAX reference that mirrors the PyTorch ops (for validation)."""
    def conv_t(x, w):
        # ConvTranspose2d, kernel (1,k), stride (1,k), no padding, no bias.
        k = w.shape[-1]
        y = jnp.einsum('bcl,cok->bolk', x[:, :, 0, :], w[:, :, 0, :],
                       precision=lax.Precision.HIGHEST)
        B, Co, Lc, _ = y.shape
        return y.reshape(B, Co, 1, Lc * k)

    def conv1x3(x, w):
        return lax.conv_general_dilated(
            x, w, window_strides=(1, 1), padding=((0, 0), (1, 1)),
            dimension_numbers=('NCHW', 'OIHW', 'NCHW'),
            precision=lax.Precision.HIGHEST)

    s2 = conv_t(side_out2, params["up2"])
    s3 = conv_t(side_out3, params["up3"])
    fuse = jnp.concatenate([side_out1, s2, s3], axis=1)
    fuse = conv1x3(fuse, params["fusion"])
    fuse = conv1x3(fuse, params["fusion2"])
    fuse = conv1x3(fuse, params["fusion3"])
    B, num, _, local_l = fuse.shape
    out = fuse.reshape(-1, num, local_l)
    if num == 1:
        out = jnp.squeeze(out, axis=1)
    return out


if __name__ == "__main__":
    key = jax.random.PRNGKey(0)
    B, d1, d2, d3, L = 2, 32, 32, 32, 64   # small shapes; L must be divisible by 8
    kx1, kx2, kx3, kw = jax.random.split(key, 4)
    side_out1 = jax.random.normal(kx1, (B, d1, 1, L), jnp.float32)
    side_out2 = jax.random.normal(kx2, (B, d2, 1, L // 4), jnp.float32)
    side_out3 = jax.random.normal(kx3, (B, d3, 1, L // 8), jnp.float32)
    params = init_params(kw, d1=d1, d2=d2, d3=d3, fusion_times=1)

    out = jax.block_until_ready(
        fusion_forward_pallas(side_out1, side_out2, side_out3, params))
    ref = jax.block_until_ready(
        fusion_forward_reference(side_out1, side_out2, side_out3, params))

    assert out.shape == ref.shape, (out.shape, ref.shape)
    max_err = jnp.max(jnp.abs(out - ref))
    # bf16-streamed activations + DEFAULT (bf16) MXU precision vs HIGHEST-precision ref.
    if not jnp.allclose(out, ref, atol=2e-2, rtol=2e-2):
        raise AssertionError(f"Pallas/reference mismatch, max abs err = {max_err}")
    print("KERNEL_OK")
</pallas_src>

<mosaic_0001>
module attributes {stable_mosaic.version = 11 : i64} {
  func.func @_fusion_kernel(%arg0: i32, %arg1: memref<16x128xbf16, #tpu.memory_space<vmem>>, %arg2: memref<16x32xbf16, #tpu.memory_space<vmem>>, %arg3: memref<16x32xbf16, #tpu.memory_space<vmem>>, %arg4: memref<32x128xf32, #tpu.memory_space<vmem>>, %arg5: memref<32x128xf32, #tpu.memory_space<vmem>>, %arg6: memref<32x128xf32, #tpu.memory_space<vmem>>, %arg7: memref<1152x128xf32, #tpu.memory_space<vmem>>, %arg8: memref<384x128xf32, #tpu.memory_space<vmem>>, %arg9: memref<384x8xf32, #tpu.memory_space<vmem>>, %arg10: memref<16x8xf32, #tpu.memory_space<vmem>>) attributes {dimension_semantics = [#tpu.dimension_semantics<parallel>], iteration_bounds = array<i64: 2>, scalar_prefetch = 0 : i64, scratch_operands = 0 : i64, tpu.core_type = #tpu.core_type<tc>, window_params = [{transform_indices = @transform_0, window_bounds = array<i64: 16, 128>}, {transform_indices = @transform_1, window_bounds = array<i64: 16, 32>}, {transform_indices = @transform_2, window_bounds = array<i64: 16, 32>}, {pipeline_mode = #tpu.pipeline_mode<synchronous>, transform_indices = @transform_3, window_bounds = array<i64: 32, 128>}, {pipeline_mode = #tpu.pipeline_mode<synchronous>, transform_indices = @transform_4, window_bounds = array<i64: 32, 128>}, {pipeline_mode = #tpu.pipeline_mode<synchronous>, transform_indices = @transform_5, window_bounds = array<i64: 32, 128>}, {pipeline_mode = #tpu.pipeline_mode<synchronous>, transform_indices = @transform_6, window_bounds = array<i64: 1152, 128>}, {pipeline_mode = #tpu.pipeline_mode<synchronous>, transform_indices = @transform_7, window_bounds = array<i64: 384, 128>}, {pipeline_mode = #tpu.pipeline_mode<synchronous>, transform_indices = @transform_8, window_bounds = array<i64: 384, 8>}, {transform_indices = @transform_9, window_bounds = array<i64: 16, 8>}]} {
    %c0 = arith.constant 0 : index
    %c0_0 = arith.constant 0 : index
    %0 = vector.load %arg1[%c0, %c0_0] : memref<16x128xbf16, #tpu.memory_space<vmem>>, vector<16x128xbf16>
    %1 = arith.extf %0 : vector<16x128xbf16> to vector<16x128xf32>
    %c0_1 = arith.constant 0 : index
    %c0_2 = arith.constant 0 : index
    %2 = vector.load %arg2[%c0_1, %c0_2] : memref<16x32xbf16, #tpu.memory_space<vmem>>, vector<16x32xbf16>
    %3 = arith.extf %2 : vector<16x32xbf16> to vector<16x32xf32>
    %c0_3 = arith.constant 0 : index
    %c0_4 = arith.constant 0 : index
    %4 = vector.load %arg3[%c0_3, %c0_4] : memref<16x32xbf16, #tpu.memory_space<vmem>>, vector<16x32xbf16>
    %5 = arith.extf %4 : vector<16x32xbf16> to vector<16x32xf32>
    %6 = tpu.iota {dimensions = array<i32: 0>} : vector<16x1xi32>
    %c16_i32 = arith.constant 16 : i32
    %c0_i32 = arith.constant 0 : i32
    %7 = arith.cmpi eq, %c16_i32, %c0_i32 : i32
    %c1_i32 = arith.constant 1 : i32
    %8 = arith.select %7, %c1_i32, %c16_i32 : i32
    %9 = vector.broadcast %8 : i32 to vector<16x1xi32>
    %10 = arith.remsi %6, %9 : vector<16x1xi32>
    %c0_i32_5 = arith.constant 0 : i32
    %11 = vector.broadcast %c0_i32_5 : i32 to vector<16x1xi32>
    %12 = arith.cmpi ne, %10, %11 : vector<16x1xi32>
    %c0_i32_6 = arith.constant 0 : i32
    %13 = vector.broadcast %c0_i32_6 : i32 to vector<16x1xi32>
    %14 = arith.cmpi slt, %10, %13 : vector<16x1xi32>
    %c0_i32_7 = arith.constant 0 : i32
    %15 = arith.cmpi slt, %8, %c0_i32_7 : i32
    %16 = vector.broadcast %15 : i1 to vector<16x1xi1>
    %17 = vector.broadcast %16 : vector<16x1xi1> to vector<16x1xi1>
    %18 = arith.xori %14, %17 : vector<16x1xi1>
    %19 = arith.andi %18, %12 : vector<16x1xi1>
    %20 = vector.broadcast %8 : i32 to vector<16x1xi32>
    %21 = arith.addi %10, %20 : vector<16x1xi32>
    %22 = arith.select %19, %21, %10 : vector<16x1xi1>, vector<16x1xi32>
    %c0_i32_8 = arith.constant 0 : i32
    %23 = vector.broadcast %c0_i32_8 : i32 to vector<16x1xi32>
    %24 = arith.cmpi ne, %22, %23 : vector<16x1xi32>
    %c15_i32 = arith.constant 15 : i32
    %25 = vector.broadcast %c15_i32 : i32 to vector<16x1xi32>
    %26 = arith.cmpi ne, %22, %25 : vector<16x1xi32>
    %c2_i32 = arith.constant 2 : i32
    %c0_i32_9 = arith.constant 0 : i32
    %27 = arith.cmpi eq, %c2_i32, %c0_i32_9 : i32
    %c1_i32_10 = arith.constant 1 : i32
    %28 = arith.select %27, %c1_i32_10, %c2_i32 : i32
    %29 = vector.broadcast %28 : i32 to vector<16x1xi32>
    %30 = arith.remsi %6, %29 : vector<16x1xi32>
    %c0_i32_11 = arith.constant 0 : i32
    %31 = vector.broadcast %c0_i32_11 : i32 to vector<16x1xi32>
    %32 = arith.cmpi ne, %30, %31 : vector<16x1xi32>
    %c0_i32_12 = arith.constant 0 : i32
    %33 = vector.broadcast %c0_i32_12 : i32 to vector<16x1xi32>
    %34 = arith.cmpi slt, %30, %33 : vector<16x1xi32>
    %c0_i32_13 = arith.constant 0 : i32
    %35 = arith.cmpi slt, %28, %c0_i32_13 : i32
    %36 = vector.broadcast %35 : i1 to vector<16x1xi1>
    %37 = vector.broadcast %36 : vector<16x1xi1> to vector<16x1xi1>
    %38 = arith.xori %34, %37 : vector<16x1xi1>
    %39 = arith.andi %38, %32 : vector<16x1xi1>
    %40 = vector.broadcast %28 : i32 to vector<16x1xi32>
    %41 = arith.addi %30, %40 : vector<16x1xi32>
    %42 = arith.select %39, %41, %30 : vector<16x1xi1>, vector<16x1xi32>
    %c1_i32_14 = arith.constant 1 : i32
    %43 = vector.broadcast %c1_i32_14 : i32 to vector<16x1xi32>
    %44 = arith.cmpi eq, %42, %43 : vector<16x1xi32>
    %c0_15 = arith.constant 0 : index
    %c0_16 = arith.constant 0 : index
    %45 = vector.load %arg4[%c0_15, %c0_16] : memref<32x128xf32, #tpu.memory_space<vmem>>, vector<32x128xf32>
    %cst = arith.constant dense<0.000000e+00> : vector<16x128xf32>
    %46 = tpu.matmul %3, %45, %cst {dimension_numbers = #tpu.dot_dimension_numbers<[1], [0], [0], [1], [0, 0, 1, 1], [], []>} : vector<16x32xf32>, vector<32x128xf32>, vector<16x128xf32> -> vector<16x128xf32>
    %c0_17 = arith.constant 0 : index
    %c0_18 = arith.constant 0 : index
    %47 = vector.load %arg6[%c0_17, %c0_18] : memref<32x128xf32, #tpu.memory_space<vmem>>, vector<32x128xf32>
    %cst_19 = arith.constant dense<0.000000e+00> : vector<16x128xf32>
    %48 = tpu.matmul %5, %47, %cst_19 {dimension_numbers = #tpu.dot_dimension_numbers<[1], [0], [0], [1], [0, 0, 1, 1], [], []>} : vector<16x32xf32>, vector<32x128xf32>, vector<16x128xf32> -> vector<16x128xf32>
    %c0_20 = arith.constant 0 : index
    %c0_21 = arith.constant 0 : index
    %49 = vector.load %arg5[%c0_20, %c0_21] : memref<32x128xf32, #tpu.memory_space<vmem>>, vector<32x128xf32>
    %cst_22 = arith.constant dense<0.000000e+00> : vector<16x128xf32>
    %50 = tpu.matmul %5, %49, %cst_22 {dimension_numbers = #tpu.dot_dimension_numbers<[1], [0], [0], [1], [0, 0, 1, 1], [], []>} : vector<16x32xf32>, vector<32x128xf32>, vector<16x128xf32> -> vector<16x128xf32>
    %51 = vector.shape_cast %44 : vector<16x1xi1> to vector<16x1xi1>
    %52 = vector.broadcast %51 : vector<16x1xi1> to vector<16x128xi1>
    %53 = arith.select %52, %48, %50 : vector<16x128xi1>, vector<16x128xf32>
    %54 = tpu.concatenate %1, %46, %53 in 1 : vector<16x128xf32>, vector<16x128xf32>, vector<16x128xf32> -> vector<16x384xf32>
    %c1_i32_23 = arith.constant 1 : i32
    %55 = tpu.dynamic_rotate %54 by %c1_i32_23 dim 0 : vector<16x384xf32>, i32 -> vector<16x384xf32>
    %cst_24 = arith.constant 0.000000e+00 : f32
    %56 = vector.shape_cast %24 : vector<16x1xi1> to vector<16x1xi1>
    %57 = vector.broadcast %56 : vector<16x1xi1> to vector<16x384xi1>
    %58 = vector.broadcast %cst_24 : f32 to vector<16x384xf32>
    %59 = arith.select %57, %55, %58 : vector<16x384xi1>, vector<16x384xf32>
    %c15_i32_25 = arith.constant 15 : i32
    %60 = tpu.dynamic_rotate %54 by %c15_i32_25 dim 0 : vector<16x384xf32>, i32 -> vector<16x384xf32>
    %cst_26 = arith.constant 0.000000e+00 : f32
    %61 = vector.shape_cast %26 : vector<16x1xi1> to vector<16x1xi1>
    %62 = vector.broadcast %61 : vector<16x1xi1> to vector<16x384xi1>
    %63 = vector.broadcast %cst_26 : f32 to vector<16x384xf32>
    %64 = arith.select %62, %60, %63 : vector<16x384xi1>, vector<16x384xf32>
    %65 = tpu.concatenate %59, %54, %64 in 1 : vector<16x384xf32>, vector<16x384xf32>, vector<16x384xf32> -> vector<16x1152xf32>
    %c0_27 = arith.constant 0 : index
    %c0_28 = arith.constant 0 : index
    %66 = vector.load %arg7[%c0_27, %c0_28] : memref<1152x128xf32, #tpu.memory_space<vmem>>, vector<1152x128xf32>
    %cst_29 = arith.constant dense<0.000000e+00> : vector<16x128xf32>
    %67 = tpu.matmul %65, %66, %cst_29 {dimension_numbers = #tpu.dot_dimension_numbers<[1], [0], [0], [1], [0, 0, 1, 1], [], []>} : vector<16x1152xf32>, vector<1152x128xf32>, vector<16x128xf32> -> vector<16x128xf32>
    %c1_i32_30 = arith.constant 1 : i32
    %68 = tpu.dynamic_rotate %67 by %c1_i32_30 dim 0 : vector<16x128xf32>, i32 -> vector<16x128xf32>
    %cst_31 = arith.constant 0.000000e+00 : f32
    %69 = vector.shape_cast %24 : vector<16x1xi1> to vector<16x1xi1>
    %70 = vector.broadcast %69 : vector<16x1xi1> to vector<16x128xi1>
    %71 = vector.broadcast %cst_31 : f32 to vector<16x128xf32>
    %72 = arith.select %70, %68, %71 : vector<16x128xi1>, vector<16x128xf32>
    %c15_i32_32 = arith.constant 15 : i32
    %73 = tpu.dynamic_rotate %67 by %c15_i32_32 dim 0 : vector<16x128xf32>, i32 -> vector<16x128xf32>
    %cst_33 = arith.constant 0.000000e+00 : f32
    %74 = vector.shape_cast %26 : vector<16x1xi1> to vector<16x1xi1>
    %75 = vector.broadcast %74 : vector<16x1xi1> to vector<16x128xi1>
    %76 = vector.broadcast %cst_33 : f32 to vector<16x128xf32>
    %77 = arith.select %75, %73, %76 : vector<16x128xi1>, vector<16x128xf32>
    %78 = tpu.concatenate %72, %67, %77 in 1 : vector<16x128xf32>, vector<16x128xf32>, vector<16x128xf32> -> vector<16x384xf32>
    %c0_34 = arith.constant 0 : index
    %c0_35 = arith.constant 0 : index
    %79 = vector.load %arg8[%c0_34, %c0_35] : memref<384x128xf32, #tpu.memory_space<vmem>>, vector<384x128xf32>
    %cst_36 = arith.constant dense<0.000000e+00> : vector<16x128xf32>
    %80 = tpu.matmul %78, %79, %cst_36 {dimension_numbers = #tpu.dot_dimension_numbers<[1], [0], [0], [1], [0, 0, 1, 1], [], []>} : vector<16x384xf32>, vector<384x128xf32>, vector<16x128xf32> -> vector<16x128xf32>
    %c1_i32_37 = arith.constant 1 : i32
    %81 = tpu.dynamic_rotate %80 by %c1_i32_37 dim 0 : vector<16x128xf32>, i32 -> vector<16x128xf32>
    %cst_38 = arith.constant 0.000000e+00 : f32
    %82 = vector.shape_cast %24 : vector<16x1xi1> to vector<16x1xi1>
    %83 = vector.broadcast %82 : vector<16x1xi1> to vector<16x128xi1>
    %84 = vector.broadcast %cst_38 : f32 to vector<16x128xf32>
    %85 = arith.select %83, %81, %84 : vector<16x128xi1>, vector<16x128xf32>
    %c15_i32_39 = arith.constant 15 : i32
    %86 = tpu.dynamic_rotate %80 by %c15_i32_39 dim 0 : vector<16x128xf32>, i32 -> vector<16x128xf32>
    %cst_40 = arith.constant 0.000000e+00 : f32
    %87 = vector.shape_cast %26 : vector<16x1xi1> to vector<16x1xi1>
    %88 = vector.broadcast %87 : vector<16x1xi1> to vector<16x128xi1>
    %89 = vector.broadcast %cst_40 : f32 to vector<16x128xf32>
    %90 = arith.select %88, %86, %89 : vector<16x128xi1>, vector<16x128xf32>
    %91 = tpu.concatenate %85, %80, %90 in 1 : vector<16x128xf32>, vector<16x128xf32>, vector<16x128xf32> -> vector<16x384xf32>
    %c0_41 = arith.constant 0 : index
    %c0_42 = arith.constant 0 : index
    %92 = vector.load %arg9[%c0_41, %c0_42] : memref<384x8xf32, #tpu.memory_space<vmem>>, vector<384x8xf32>
    %cst_43 = arith.constant dense<0.000000e+00> : vector<16x8xf32>
    %93 = tpu.matmul %91, %92, %cst_43 {dimension_numbers = #tpu.dot_dimension_numbers<[1], [0], [0], [1], [0, 0, 1, 1], [], []>} : vector<16x384xf32>, vector<384x8xf32>, vector<16x8xf32> -> vector<16x8xf32>
    %c0_44 = arith.constant 0 : index
    %c0_45 = arith.constant 0 : index
    %94 = vector.load %arg10[%c0_44, %c0_45] : memref<16x8xf32, #tpu.memory_space<vmem>>, vector<16x8xf32>
    tpu.vector_store %arg10[%c0_44, %c0_45], %93 {strides = array<i32>} : memref<16x8xf32, #tpu.memory_space<vmem>>, vector<16x8xf32>,
    return
  }
  func.func @transform_0(%arg0: i32) -> (i32, i32) {
    %c0_i32 = arith.constant 0 : i32
    %c0_i32_0 = arith.constant 0 : i32
    return %arg0, %c0_i32 : i32, i32
  }
  func.func @transform_1(%arg0: i32) -> (i32, i32) {
    %c0_i32 = arith.constant 0 : i32
    %c0_i32_0 = arith.constant 0 : i32
    return %arg0, %c0_i32 : i32, i32
  }
  func.func @transform_2(%arg0: i32) -> (i32, i32) {
    %c0_i32 = arith.constant 0 : i32
    %c0_i32_0 = arith.constant 0 : i32
    return %arg0, %c0_i32 : i32, i32
  }
  func.func @transform_3(%arg0: i32) -> (i32, i32) {
    %c0_i32 = arith.constant 0 : i32
    %c0_i32_0 = arith.constant 0 : i32
    %c0_i32_1 = arith.constant 0 : i32
    return %c0_i32, %c0_i32_0 : i32, i32
  }
  func.func @transform_4(%arg0: i32) -> (i32, i32) {
    %c0_i32 = arith.constant 0 : i32
    %c0_i32_0 = arith.constant 0 : i32
    %c0_i32_1 = arith.constant 0 : i32
    return %c0_i32, %c0_i32_0 : i32, i32
  }
  func.func @transform_5(%arg0: i32) -> (i32, i32) {
    %c0_i32 = arith.constant 0 : i32
    %c0_i32_0 = arith.constant 0 : i32
    %c0_i32_1 = arith.constant 0 : i32
    return %c0_i32, %c0_i32_0 : i32, i32
  }
  func.func @transform_6(%arg0: i32) -> (i32, i32) {
    %c0_i32 = arith.constant 0 : i32
    %c0_i32_0 = arith.constant 0 : i32
    %c0_i32_1 = arith.constant 0 : i32
    return %c0_i32, %c0_i32_0 : i32, i32
  }
  func.func @transform_7(%arg0: i32) -> (i32, i32) {
    %c0_i32 = arith.constant 0 : i32
    %c0_i32_0 = arith.constant 0 : i32
    %c0_i32_1 = arith.constant 0 : i32
    return %c0_i32, %c0_i32_0 : i32, i32
  }
  func.func @transform_8(%arg0: i32) -> (i32, i32) {
    %c0_i32 = arith.constant 0 : i32
    %c0_i32_0 = arith.constant 0 : i32
    %c0_i32_1 = arith.constant 0 : i32
    return %c0_i32, %c0_i32_0 : i32, i32
  }
  func.func @transform_9(%arg0: i32) -> (i32, i32) {
    %c0_i32 = arith.constant 0 : i32
    %c0_i32_0 = arith.constant 0 : i32
    return %arg0, %c0_i32 : i32, i32
  }
}

</mosaic_0001>

<llo_original>
// kernel: tpu_custom_call.1
$region0: #{tpu_custom_call.1}
  #allocation0 [shape = 'u32[]', space=smem, size = 0x4, offset = 0x4, fixed_abs, tag = 'smem constant byte address 0x4 - core index']
  #allocation1 [shape = 'u32[144,128]{1,0:T(1,128)}', space=vmem, size = 0x12000, scoped, tag = 'internal scratch']
  %s0 = inlined_call_operand.hbm [shape: bf16[32,128], index: 0, kind: input, shape index: {}]
  %s1 = inlined_call_operand.hbm [shape: bf16[32,32], index: 1, kind: input, shape index: {}]
  %s2 = inlined_call_operand.hbm [shape: bf16[32,32], index: 2, kind: input, shape index: {}]
  %s3 = inlined_call_operand.vmem [shape: f32[32,128], index: 3, kind: input, shape index: {}]
  %s4 = inlined_call_operand.hbm [shape: f32[32,128], index: 4, kind: input, shape index: {}]
  %s5 = inlined_call_operand.hbm [shape: f32[32,128], index: 5, kind: input, shape index: {}]
  %s6 = inlined_call_operand.hbm [shape: f32[1152,128], index: 6, kind: input, shape index: {}]
  %s7 = inlined_call_operand.vmem [shape: f32[384,128], index: 7, kind: input, shape index: {}]
  %s8 = inlined_call_operand.vmem [shape: f32[384,8], index: 8, kind: input, shape index: {}]
  %s9 = inlined_call_operand.vmem [shape: f32[32,8], index: 9, kind: output, shape index: {}]
  %s10 = sld [smem:[#allocation0]]
  $region93: #{tpu_custom_call.1} parent=0
    _
  %s12 = ssub.s32 1, %s10
  %s13 = scalar_select 0, %s12, %s10
  $region1: #{tpu_custom_call.1} parent=0
    #allocation2 [shape = 'u8[8192]{0}', space=vmem, size = 0x2000, scoped, tag = 'input window, operand 0']
    #allocation3 [shape = 's32[2]{0}', space=sflag, size = 0x8, scoped, tag = 'scoped memory for tpu_custom_call.1']
    #allocation4 [shape = 'u8[8192]{0}', space=vmem, size = 0x2000, scoped, tag = 'input window, operand 1']
    #allocation5 [shape = 's32[2]{0}', space=sflag, size = 0x8, scoped, tag = 'scoped memory for tpu_custom_call.1']
    #allocation6 [shape = 'u8[8192]{0}', space=vmem, size = 0x2000, scoped, tag = 'input window, operand 2']
    #allocation7 [shape = 'u8[16384]{0}', space=vmem, size = 0x4000, scoped, tag = 'input window, operand 4, single buffered']
    #allocation8 [shape = 's32[1]{0}', space=sflag, size = 0x4, scoped, tag = 'scoped memory for tpu_custom_call.1']
    #allocation9 [shape = 'u8[16384]{0}', space=vmem, size = 0x4000, scoped, tag = 'input window, operand 5, single buffered']
    #allocation10 [shape = 'u8[589824]{0}', space=vmem, size = 0x90000, scoped, tag = 'input window, operand 6, single buffered']
    #allocation11 [shape = 's32[1]{0}', space=sflag, size = 0x4, scoped, tag = 'scoped memory for tpu_custom_call.1']
    %14 = vsyncpa [#allocation3], 0
    %s15 = scalar_lea.sflag [#allocation3], 1
    %16 = vsyncpa %s15, 0
    %17 = vsyncpa [#allocation5], 0
    %s18 = scalar_lea.sflag [#allocation5], 1
    %19 = vsyncpa %s18, 0
    %20 = vsyncpa [#allocation8], 0
    %21 = vsyncpa [#allocation11], 0
    loop: start=0, step=1, limit=4
    $region2: #{tpu_custom_call.1} parent=1 // loop_pre_header
      _
    $region3: #{tpu_custom_call.1} parent=1 // loop_header
      %s23 = sphi 0, %s27
      %p24 = scmp.ge.s32.totalorder %s23, 4
      %s33 = sphi 0, %s35
      %s36 = sphi 0, %s33
      %s37 = sphi 0, %s36
      %s53 = sphi 0, %s37
      %s59 = sphi 0, %s61
      %s62 = sphi 0, %s59
      %s63 = sphi 0, %s62
      %s79 = sphi 0, %s63
      %s85 = sphi 0, %s87
      %s88 = sphi 0, %s85
      %s89 = sphi 0, %s88
      %s105 = sphi 0, %s89
      %s109 = sphi 0, %s109
      %s111 = sphi 0, %s109
      %s112 = sphi 0, %s111
      %s126 = sphi 0, %s112
      %s130 = sphi 0, %s130
      %s132 = sphi 0, %s130
      %s133 = sphi 0, %s132
      %s147 = sphi 0, %s133
      %s151 = sphi 0, %s151
      %s153 = sphi 0, %s151
      %s154 = sphi 0, %s153
      %s168 = sphi 0, %s154
      %s172 = sphi 0, %s172
      %s174 = sphi 0, %s172
      %s175 = sphi 0, %s174
      %s189 = sphi 0, %s175
      %s193 = sphi 0, %s193
      %s195 = sphi 0, %s193
      %s196 = sphi 0, %s195
      %s210 = sphi 0, %s196
      %s214 = sphi 0, %s214
      %s216 = sphi 0, %s214
      %s217 = sphi 0, %s216
      %s231 = sphi 0, %s217
      %s237 = sphi 0, %s239
      %s240 = sphi 0, %s237
      %s241 = sphi 0, %s240
      %s257 = sphi 0, %s241
    $region4: #{tpu_custom_call.1} parent=1 // loop_header_branch
      %26 = sbr.rel (%p24) target = $region8
    $region5: #{tpu_custom_call.1} parent=1 // loop_body
      %s28 = ssub.s32 %s23, 1
      %s29 = ssub.s32 %s23, 2
      %s30 = sadd.s32 %s23, 1
      %s31 = ssub.s32 %s23, %s30
      %p32 = scmp.eq.s32.totalorder %s31, 0
      %s34 = sadd.s32 %s33, 1
      %s35 = scalar_select %p32, %s33, %s34
      %p38 = pneg %p32
      %p39 = scmp.eq.s32.totalorder %s23, 1
      %p40 = por %p38, %p39
      %p41 = scmp.ne.s32.totalorder %s33, %s36
      %p42 = scmp.eq.s32.totalorder %s23, 0
      %p43 = por %p41, %p42
      %p44 = scmp.ne.s32.totalorder %s33, %s36
      %p45 = scmp.eq.s32.totalorder %s28, 1
      %p46 = por %p44, %p45
      %p47 = scmp.ne.s32.totalorder %s36, %s37
      %p48 = scmp.eq.s32.totalorder %s28, 0
      %p49 = por %p47, %p48
      %p50 = scmp.ne.s32.totalorder %s36, %s37
      %p51 = scmp.eq.s32.totalorder %s29, 1
      %p52 = por %p50, %p51
      %p54 = scmp.ne.s32.totalorder %s37, %s53
      %p55 = scmp.eq.s32.totalorder %s29, 0
      %p56 = por %p54, %p55
      %s57 = ssub.s32 %s23, %s30
      %p58 = scmp.eq.s32.totalorder %s57, 0
      %s60 = sadd.s32 %s59, 1
      %s61 = scalar_select %p58, %s59, %s60
      %p64 = pneg %p58
      %p65 = scmp.eq.s32.totalorder %s23, 1
      %p66 = por %p64, %p65
      %p67 = scmp.ne.s32.totalorder %s59, %s62
      %p68 = scmp.eq.s32.totalorder %s23, 0
      %p69 = por %p67, %p68
      %p70 = scmp.ne.s32.totalorder %s59, %s62
      %p71 = scmp.eq.s32.totalorder %s28, 1
      %p72 = por %p70, %p71
      %p73 = scmp.ne.s32.totalorder %s62, %s63
      %p74 = scmp.eq.s32.totalorder %s28, 0
      %p75 = por %p73, %p74
      %p76 = scmp.ne.s32.totalorder %s62, %s63
      %p77 = scmp.eq.s32.totalorder %s29, 1
      %p78 = por %p76, %p77
      %p80 = scmp.ne.s32.totalorder %s63, %s79
      %p81 = scmp.eq.s32.totalorder %s29, 0
      %p82 = por %p80, %p81
      %s83 = ssub.s32 %s23, %s30
      %p84 = scmp.eq.s32.totalorder %s83, 0
      %s86 = sadd.s32 %s85, 1
      %s87 = scalar_select %p84, %s85, %s86
      %p90 = pneg %p84
      %p91 = scmp.eq.s32.totalorder %s23, 1
      %p92 = por %p90, %p91
      %p93 = scmp.ne.s32.totalorder %s85, %s88
      %p94 = scmp.eq.s32.totalorder %s23, 0
      %p95 = por %p93, %p94
      %p96 = scmp.ne.s32.totalorder %s85, %s88
      %p97 = scmp.eq.s32.totalorder %s28, 1
      %p98 = por %p96, %p97
      %p99 = scmp.ne.s32.totalorder %s88, %s89
      %p100 = scmp.eq.s32.totalorder %s28, 0
      %p101 = por %p99, %p100
      %p102 = scmp.ne.s32.totalorder %s88, %s89
      %p103 = scmp.eq.s32.totalorder %s29, 1
      %p104 = por %p102, %p103
      %p106 = scmp.ne.s32.totalorder %s89, %s105
      %p107 = scmp.eq.s32.totalorder %s29, 0
      %p108 = por %p106, %p107
      %s110 = sadd.s32 %s109, 1
      %p113 = scmp.eq.s32.totalorder %s23, 1
      %p114 = scmp.ne.s32.totalorder %s109, %s111
      %p115 = scmp.eq.s32.totalorder %s23, 0
      %p116 = por %p114, %p115
      %p117 = scmp.ne.s32.totalorder %s109, %s111
      %p118 = scmp.eq.s32.totalorder %s28, 1
      %p119 = por %p117, %p118
      %p120 = scmp.ne.s32.totalorder %s111, %s112
      %p121 = scmp.eq.s32.totalorder %s28, 0
      %p122 = por %p120, %p121
      %p123 = scmp.ne.s32.totalorder %s111, %s112
      %p124 = scmp.eq.s32.totalorder %s29, 1
      %p125 = por %p123, %p124
      %p127 = scmp.ne.s32.totalorder %s112, %s126
      %p128 = scmp.eq.s32.totalorder %s29, 0
      %p129 = por %p127, %p128
      %s131 = sadd.s32 %s130, 1
      %p134 = scmp.eq.s32.totalorder %s23, 1
      %p135 = scmp.ne.s32.totalorder %s130, %s132
      %p136 = scmp.eq.s32.totalorder %s23, 0
      %p137 = por %p135, %p136
      %p138 = scmp.ne.s32.totalorder %s130, %s132
      %p139 = scmp.eq.s32.totalorder %s28, 1
      %p140 = por %p138, %p139
      %p141 = scmp.ne.s32.totalorder %s132, %s133
      %p142 = scmp.eq.s32.totalorder %s28, 0
      %p143 = por %p141, %p142
      %p144 = scmp.ne.s32.totalorder %s132, %s133
      %p145 = scmp.eq.s32.totalorder %s29, 1
      %p146 = por %p144, %p145
      %p148 = scmp.ne.s32.totalorder %s133, %s147
      %p149 = scmp.eq.s32.totalorder %s29, 0
      %p150 = por %p148, %p149
      %s152 = sadd.s32 %s151, 1
      %p155 = scmp.eq.s32.totalorder %s23, 1
      %p156 = scmp.ne.s32.totalorder %s151, %s153
      %p157 = scmp.eq.s32.totalorder %s23, 0
      %p158 = por %p156, %p157
      %p159 = scmp.ne.s32.totalorder %s151, %s153
      %p160 = scmp.eq.s32.totalorder %s28, 1
      %p161 = por %p159, %p160
      %p162 = scmp.ne.s32.totalorder %s153, %s154
      %p163 = scmp.eq.s32.totalorder %s28, 0
      %p164 = por %p162, %p163
      %p165 = scmp.ne.s32.totalorder %s153, %s154
      %p166 = scmp.eq.s32.totalorder %s29, 1
      %p167 = por %p165, %p166
      %p169 = scmp.ne.s32.totalorder %s154, %s168
      %p170 = scmp.eq.s32.totalorder %s29, 0
      %p171 = por %p169, %p170
      %s173 = sadd.s32 %s172, 1
      %p176 = scmp.eq.s32.totalorder %s23, 1
      %p177 = scmp.ne.s32.totalorder %s172, %s174
      %p178 = scmp.eq.s32.totalorder %s23, 0
      %p179 = por %p177, %p178
      %p180 = scmp.ne.s32.totalorder %s172, %s174
      %p181 = scmp.eq.s32.totalorder %s28, 1
      %p182 = por %p180, %p181
      %p183 = scmp.ne.s32.totalorder %s174, %s175
      %p184 = scmp.eq.s32.totalorder %s28, 0
      %p185 = por %p183, %p184
      %p186 = scmp.ne.s32.totalorder %s174, %s175
      %p187 = scmp.eq.s32.totalorder %s29, 1
      %p188 = por %p186, %p187
      %p190 = scmp.ne.s32.totalorder %s175, %s189
      %p191 = scmp.eq.s32.totalorder %s29, 0
      %p192 = por %p190, %p191
      %s194 = sadd.s32 %s193, 1
      %p197 = scmp.eq.s32.totalorder %s23, 1
      %p198 = scmp.ne.s32.totalorder %s193, %s195
      %p199 = scmp.eq.s32.totalorder %s23, 0
      %p200 = por %p198, %p199
      %p201 = scmp.ne.s32.totalorder %s193, %s195
      %p202 = scmp.eq.s32.totalorder %s28, 1
      %p203 = por %p201, %p202
      %p204 = scmp.ne.s32.totalorder %s195, %s196
      %p205 = scmp.eq.s32.totalorder %s28, 0
      %p206 = por %p204, %p205
      %p207 = scmp.ne.s32.totalorder %s195, %s196
      %p208 = scmp.eq.s32.totalorder %s29, 1
      %p209 = por %p207, %p208
      %p211 = scmp.ne.s32.totalorder %s196, %s210
      %p212 = scmp.eq.s32.totalorder %s29, 0
      %p213 = por %p211, %p212
      %s215 = sadd.s32 %s214, 1
      %p218 = scmp.eq.s32.totalorder %s23, 1
      %p219 = scmp.ne.s32.totalorder %s214, %s216
      %p220 = scmp.eq.s32.totalorder %s23, 0
      %p221 = por %p219, %p220
      %p222 = scmp.ne.s32.totalorder %s214, %s216
      %p223 = scmp.eq.s32.totalorder %s28, 1
      %p224 = por %p222, %p223
      %p225 = scmp.ne.s32.totalorder %s216, %s217
      %p226 = scmp.eq.s32.totalorder %s28, 0
      %p227 = por %p225, %p226
      %p228 = scmp.ne.s32.totalorder %s216, %s217
      %p229 = scmp.eq.s32.totalorder %s29, 1
      %p230 = por %p228, %p229
      %p232 = scmp.ne.s32.totalorder %s217, %s231
      %p233 = scmp.eq.s32.totalorder %s29, 0
      %p234 = por %p232, %p233
      %s235 = ssub.s32 %s23, %s30
      %p236 = scmp.eq.s32.totalorder %s235, 0
      %s238 = sadd.s32 %s237, 1
      %s239 = scalar_select %p236, %s237, %s238
      %p242 = pneg %p236
      %p243 = scmp.eq.s32.totalorder %s23, 1
      %p244 = por %p242, %p243
      %p245 = scmp.ne.s32.totalorder %s237, %s240
      %p246 = scmp.eq.s32.totalorder %s23, 0
      %p247 = por %p245, %p246
      %p248 = scmp.ne.s32.totalorder %s237, %s240
      %p249 = scmp.eq.s32.totalorder %s28, 1
      %p250 = por %p248, %p249
      %p251 = scmp.ne.s32.totalorder %s240, %s241
      %p252 = scmp.eq.s32.totalorder %s28, 0
      %p253 = por %p251, %p252
      %p254 = scmp.ne.s32.totalorder %s240, %s241
      %p255 = scmp.eq.s32.totalorder %s29, 1
      %p256 = por %p254, %p255
      %p258 = scmp.ne.s32.totalorder %s241, %s257
      %p259 = scmp.eq.s32.totalorder %s29, 0
      %p260 = por %p258, %p259
      %p261 = scmp.le.s32.totalorder 1, %s23
      %p262 = scmp.lt.s32.totalorder %s23, 3
      %p263 = pnand %p261, %p262
      %p264 = pneg %p263
      // Predicated region
      $region9: #{tpu_custom_call.1} parent=5 // pred_check
        _
      $region10: #{tpu_custom_call.1} parent=5 // pred_check_branch
        %266 = sbr.rel (%p263) target = $region12
      $region11: #{tpu_custom_call.1} parent=5 // pred_region
        %s267 = ssub.s32 %s23, 1
        // Predicated region
        $region13: #{tpu_custom_call.1} parent=11 // pred_check
          %p268 = pneg %p122
        $region14: #{tpu_custom_call.1} parent=11 // pred_check_branch
          %270 = sbr.rel (%p268) target = $region16
        $region15: #{tpu_custom_call.1} parent=11 // pred_region
          _
        $region16: #{tpu_custom_call.1} parent=11 // pred_fallthru
          _
        // Predicated region
        $region17: #{tpu_custom_call.1} parent=11 // pred_check
          %p271 = pneg %p143
        $region18: #{tpu_custom_call.1} parent=11 // pred_check_branch
          %273 = sbr.rel (%p271) target = $region20
        $region19: #{tpu_custom_call.1} parent=11 // pred_region
          %s275 = ssub.s32 512, 512
          %276 = vsyncadd [#allocation8], %s275
          %s277 = sshll.u32 [#allocation7], 4
          %s278 = int_to_ptr.vmem [resolvable:$true] %s277
          %283 = dma.hbm_to_vmem [thread:$0]  %s4, 512, %s278, [#allocation8], 128, 128, 8
        $region20: #{tpu_custom_call.1} parent=11 // pred_fallthru
          _
        // Predicated region
        $region21: #{tpu_custom_call.1} parent=11 // pred_check
          %p284 = pneg %p164
        $region22: #{tpu_custom_call.1} parent=11 // pred_check_branch
          %286 = sbr.rel (%p284) target = $region24
        $region23: #{tpu_custom_call.1} parent=11 // pred_region
          %s288 = ssub.s32 512, 512
          %289 = vsyncadd [#allocation8], %s288
          %s290 = sshll.u32 [#allocation9], 4
          %s291 = int_to_ptr.vmem [resolvable:$true] %s290
          %296 = dma.hbm_to_vmem [thread:$0]  %s5, 512, %s291, [#allocation8], 128, 128, 8
        $region24: #{tpu_custom_call.1} parent=11 // pred_fallthru
          _
        // Predicated region
        $region25: #{tpu_custom_call.1} parent=11 // pred_check
          %p297 = pneg %p185
        $region26: #{tpu_custom_call.1} parent=11 // pred_check_branch
          %299 = sbr.rel (%p297) target = $region28
        $region27: #{tpu_custom_call.1} parent=11 // pred_region
          %s301 = ssub.s32 18432, 18432
          %302 = vsyncadd [#allocation11], %s301
          %s303 = sshll.u32 [#allocation10], 4
          %s304 = int_to_ptr.vmem [resolvable:$true] %s303
          %309 = dma.hbm_to_vmem [thread:$0]  %s6, 18432, %s304, [#allocation11], 128, 128, 8
        $region28: #{tpu_custom_call.1} parent=11 // pred_fallthru
          _
        // Predicated region
        $region29: #{tpu_custom_call.1} parent=11 // pred_check
          %p310 = pneg %p206
        $region30: #{tpu_custom_call.1} parent=11 // pred_check_branch
          %312 = sbr.rel (%p310) target = $region32
        $region31: #{tpu_custom_call.1} parent=11 // pred_region
          _
        $region32: #{tpu_custom_call.1} parent=11 // pred_fallthru
          _
        // Predicated region
        $region33: #{tpu_custom_call.1} parent=11 // pred_check
          %p313 = pneg %p227
        $region34: #{tpu_custom_call.1} parent=11 // pred_check_branch
          %315 = sbr.rel (%p313) target = $region36
        $region35: #{tpu_custom_call.1} parent=11 // pred_region
          _
        $region36: #{tpu_custom_call.1} parent=11 // pred_fallthru
          _
      $region12: #{tpu_custom_call.1} parent=5 // pred_fallthru
        _
      %p316 = scmp.lt.s32.totalorder %s23, 2
      // Predicated region
      $region37: #{tpu_custom_call.1} parent=5 // pred_check
        %p317 = pneg %p316
      $region38: #{tpu_custom_call.1} parent=5 // pred_check_branch
        %319 = sbr.rel (%p317) target = $region40
      $region39: #{tpu_custom_call.1} parent=5 // pred_region
        // Predicated region
        $region41: #{tpu_custom_call.1} parent=39 // pred_check
          %p320 = pneg %p43
        $region42: #{tpu_custom_call.1} parent=39 // pred_check_branch
          %322 = sbr.rel (%p320) target = $region44
        $region43: #{tpu_custom_call.1} parent=39 // pred_region
          %s323 = sand.u32 %s33, 1
          %s324 = scalar_lea.sflag [#allocation3], %s323
          %s325 = sand.u32 %s33, 1
          %s326 = smul.addr %s325, 8
          %s327 = scalar_lea.vmem [#allocation2], %s326
          %s328 = smul.u32 2, %s23
          %s330 = ssub.s32 128, 128
          %331 = vsyncadd %s324, %s330
          %s332 = smul.addr %s328, 64
          %s333 = scalar_lea.hbm %s0, %s332
          %s334 = sshll.u32 %s327, 4
          %s335 = int_to_ptr.vmem [resolvable:$true] %s334
          %340 = dma.hbm_to_vmem [thread:$0]  %s333, 128, %s335, %s324, 64, 64, 4
        $region44: #{tpu_custom_call.1} parent=39 // pred_fallthru
          _
        // Predicated region
        $region45: #{tpu_custom_call.1} parent=39 // pred_check
          %p341 = pneg %p69
        $region46: #{tpu_custom_call.1} parent=39 // pred_check_branch
          %343 = sbr.rel (%p341) target = $region48
        $region47: #{tpu_custom_call.1} parent=39 // pred_region
          %s344 = sand.u32 %s23, 1
          %s345 = scalar_lea.sflag [#allocation5], %s344
          %s346 = sand.u32 %s59, 1
          %s347 = smul.addr %s346, 8
          %s348 = scalar_lea.vmem [#allocation4], %s347
          %s349 = smul.u32 2, %s23
          %s351 = ssub.s32 128, 128
          %352 = vsyncadd %s345, %s351
          %s353 = smul.addr %s349, 64
          %s354 = scalar_lea.hbm %s1, %s353
          %s355 = sshll.u32 %s348, 4
          %s356 = int_to_ptr.vmem [resolvable:$true] %s355
          %361 = dma.hbm_to_vmem [thread:$0]  %s354, 128, %s356, %s345, 64, 64, 4
        $region48: #{tpu_custom_call.1} parent=39 // pred_fallthru
          _
        // Predicated region
        $region49: #{tpu_custom_call.1} parent=39 // pred_check
          %p362 = pneg %p95
        $region50: #{tpu_custom_call.1} parent=39 // pred_check_branch
          %364 = sbr.rel (%p362) target = $region52
        $region51: #{tpu_custom_call.1} parent=39 // pred_region
          %s365 = sand.u32 %s23, 1
          %s366 = scalar_lea.sflag [#allocation5], %s365
          %s367 = sand.u32 %s85, 1
          %s368 = smul.addr %s367, 8
          %s369 = scalar_lea.vmem [#allocation6], %s368
          %s370 = smul.u32 2, %s23
          %s372 = ssub.s32 128, 128
          %373 = vsyncadd %s366, %s372
          %s374 = smul.addr %s370, 64
          %s375 = scalar_lea.hbm %s2, %s374
          %s376 = sshll.u32 %s369, 4
          %s377 = int_to_ptr.vmem [resolvable:$true] %s376
          %382 = dma.hbm_to_vmem [thread:$0]  %s375, 128, %s377, %s366, 64, 64, 4
        $region52: #{tpu_custom_call.1} parent=39 // pred_fallthru
          _
      $region40: #{tpu_custom_call.1} parent=5 // pred_fallthru
        _
      %p383 = scmp.le.s32.totalorder 1, %s23
      %p384 = scmp.lt.s32.totalorder %s23, 3
      %p385 = pnand %p383, %p384
      %p386 = pneg %p385
      // Predicated region
      $region53: #{tpu_custom_call.1} parent=5 // pred_check
        _
      $region54: #{tpu_custom_call.1} parent=5 // pred_check_branch
        %388 = sbr.rel (%p385) target = $region56
      $region55: #{tpu_custom_call.1} parent=5 // pred_region
        %s389 = ssub.s32 %s23, 1
        %s390 = sand.u32 %s36, 1
        %s391 = scalar_lea.sflag [#allocation3], %s390
        %s392 = sand.u32 %s36, 1
        %s393 = smul.addr %s392, 8
        %s394 = scalar_lea.vmem [#allocation2], %s393
        // Predicated region
        $region57: #{tpu_custom_call.1} parent=55 // pred_check
          %p395 = pneg %p49
        $region58: #{tpu_custom_call.1} parent=55 // pred_check_branch
          %397 = sbr.rel (%p395) target = $region60
        $region59: #{tpu_custom_call.1} parent=55 // pred_region
          %398 = dma.done %s391, 128
        $region60: #{tpu_custom_call.1} parent=55 // pred_fallthru
          _
        %s399 = sand.u32 %s28, 1
        %s400 = scalar_lea.sflag [#allocation5], %s399
        %s401 = sand.u32 %s62, 1
        %s402 = smul.addr %s401, 8
        %s403 = scalar_lea.vmem [#allocation4], %s402
        // Predicated region
        $region61: #{tpu_custom_call.1} parent=55 // pred_check
          %p404 = pneg %p75
        $region62: #{tpu_custom_call.1} parent=55 // pred_check_branch
          %406 = sbr.rel (%p404) target = $region64
        $region63: #{tpu_custom_call.1} parent=55 // pred_region
          %407 = dma.done %s400, 128
        $region64: #{tpu_custom_call.1} parent=55 // pred_fallthru
          _
        %s408 = sand.u32 %s28, 1
        %s409 = scalar_lea.sflag [#allocation5], %s408
        %s410 = sand.u32 %s88, 1
        %s411 = smul.addr %s410, 8
        %s412 = scalar_lea.vmem [#allocation6], %s411
        // Predicated region
        $region65: #{tpu_custom_call.1} parent=55 // pred_check
          %p413 = pneg %p101
        $region66: #{tpu_custom_call.1} parent=55 // pred_check_branch
          %415 = sbr.rel (%p413) target = $region68
        $region67: #{tpu_custom_call.1} parent=55 // pred_region
          %416 = dma.done %s409, 128
        $region68: #{tpu_custom_call.1} parent=55 // pred_fallthru
          _
        // Predicated region
        $region69: #{tpu_custom_call.1} parent=55 // pred_check
          %p417 = pneg %p143
        $region70: #{tpu_custom_call.1} parent=55 // pred_check_branch
          %419 = sbr.rel (%p417) target = $region72
        $region71: #{tpu_custom_call.1} parent=55 // pred_region
          %420 = dma.done [#allocation8], 512
        $region72: #{tpu_custom_call.1} parent=55 // pred_fallthru
          _
        // Predicated region
        $region73: #{tpu_custom_call.1} parent=55 // pred_check
          %p421 = pneg %p164
        $region74: #{tpu_custom_call.1} parent=55 // pred_check_branch
          %423 = sbr.rel (%p421) target = $region76
        $region75: #{tpu_custom_call.1} parent=55 // pred_region
          %424 = dma.done [#allocation8], 512
        $region76: #{tpu_custom_call.1} parent=55 // pred_fallthru
          _
        // Predicated region
        $region77: #{tpu_custom_call.1} parent=55 // pred_check
          %p425 = pneg %p185
        $region78: #{tpu_custom_call.1} parent=55 // pred_check_branch
          %427 = sbr.rel (%p425) target = $region80
        $region79: #{tpu_custom_call.1} parent=55 // pred_region
          %428 = dma.done [#allocation11], 18432
        $region80: #{tpu_custom_call.1} parent=55 // pred_fallthru
          _
        %s429 = sand.u32 %s36, 1
        %s430 = scalar_lea.sflag [#allocation3], %s429
        %s431 = sand.u32 %s36, 1
        %s432 = smul.addr %s431, 8
        %s433 = scalar_lea.vmem [#allocation2], %s432
        %p434 = pneg %p49
        %p435 = pneg %p46
        %s436 = sand.u32 %s28, 1
        %s437 = scalar_lea.sflag [#allocation5], %s436
        %s438 = sand.u32 %s62, 1
        %s439 = smul.addr %s438, 8
        %s440 = scalar_lea.vmem [#allocation4], %s439
        %p441 = pneg %p75
        %p442 = pneg %p72
        %s443 = sand.u32 %s28, 1
        %s444 = scalar_lea.sflag [#allocation5], %s443
        %s445 = sand.u32 %s88, 1
        %s446 = smul.addr %s445, 8
        %s447 = scalar_lea.vmem [#allocation6], %s446
        %p448 = pneg %p101
        %p449 = pneg %p98
        %p450 = pneg %p122
        %p451 = pneg %p119
        %p452 = pneg %p143
        %p453 = pneg %p140
        %p454 = pneg %p164
        %p455 = pneg %p161
        %p456 = pneg %p185
        %p457 = pneg %p182
        %p458 = pneg %p206
        %p459 = pneg %p203
        %p460 = pneg %p227
        %p461 = pneg %p224
        %p462 = pneg %p253
        %p463 = pneg %p250
        %s464 = smul.u32 2, %s28
        %p465 = scmp.lt.s32.totalorder %s464, 3
        %s466 = scalar_select %p465, %s464, 3
        %s467 = smul.addr %s466, 8
        %s468 = scalar_lea.vmem %s9, %s467
        %s469 = smul.u32 2, %s28
        %s470 = smul.u32 2, %s28
        %s471 = smul.u32 2, %s28
        %s472 = smul.u32 2, %s28
        %p473 = scmp.lt.s32.totalorder %s472, 3
        %s474 = scalar_select %p473, %s472, 3
        %s475 = smul.addr %s474, 8
        %s476 = scalar_lea.vmem %s9, %s475
        %s477 = smul.u32 2, %s28
        %v478 = vld [vmem:[%s394] sm:$0xf]
        %v479 = vld [vmem:[%s394 + $0x4] sm:$0xf]
        %v480 = vunpack.c.l.bf16 %v478
        %v481 = vunpack.c.l.bf16 %v479
        %v482 = vld [vmem:[%s403] sm:$0xf]
        %v483 = vld [vmem:[%s403 + $0x4] sm:$0xf]
        %v484 = vunpack.c.l.bf16 %v482
        %v485 = vunpack.c.l.bf16 %v483
        %v486 = vld [vmem:[%s412] sm:$0xf]
        %v487 = vld [vmem:[%s412 + $0x4] sm:$0xf]
        %v488 = vunpack.c.l.bf16 %v486
        %v489 = vunpack.c.l.bf16 %v487
        %v490 = vlaneseq
        %v491 = vshrl.u32 %v490, 7
        %v492 = vadd.s32 %v491, 8
        %vm493 = vcmp.lt.s32.totalorder %v491, 0
        %v494 = vsub.s32 0, %v491
        %v495 = vsel %vm493, %v494, %v491
        %v496 = vshrl.u32 %v495, 4
        %v497 = vand.u32 %v495, 15
        %v498 = vsub.s32 0, %v497
        %v499 = vsel %vm493, %v498, %v497
        %vm500 = vcmp.lt.s32.totalorder %v492, 0
        %v501 = vsub.s32 0, %v492
        %v502 = vsel %vm500, %v501, %v492
        %v503 = vshrl.u32 %v502, 4
        %v504 = vand.u32 %v502, 15
        %v505 = vsub.s32 0, %v504
        %v506 = vsel %vm500, %v505, %v504
        %vm507 = vcmp.ne.s32.totalorder %v499, 0
        %vm508 = vcmp.ne.s32.totalorder %v506, 0
        %vm509 = vcmp.lt.s32.totalorder %v499, 0
        %vm510 = vcmp.lt.s32.totalorder %v506, 0
        %vm511 = vmand %vm509, %vm507
        %vm512 = vmand %vm510, %vm508
        %v513 = vadd.s32 %v499, 16
        %v514 = vadd.s32 %v506, 16
        %v515 = vsel %vm511, %v513, %v499
        %v516 = vsel %vm512, %v514, %v506
        %vm517 = vcmp.ne.s32.totalorder %v515, 0
        %vm518 = vcmp.ne.s32.totalorder %v516, 0
        %vm519 = vcmp.ne.s32.totalorder %v515, 15
        %vm520 = vcmp.ne.s32.totalorder %v516, 15
        %vm521 = vcmp.lt.s32.totalorder %v491, 0
        %v522 = vsub.s32 0, %v491
        %v523 = vsel %vm521, %v522, %v491
        %v524 = vshrl.u32 %v523, 1
        %v525 = vand.u32 %v523, 1
        %v526 = vsub.s32 0, %v525
        %v527 = vsel %vm521, %v526, %v525
        %vm528 = vcmp.lt.s32.totalorder %v492, 0
        %v529 = vsub.s32 0, %v492
        %v530 = vsel %vm528, %v529, %v492
        %v531 = vshrl.u32 %v530, 1
        %v532 = vand.u32 %v530, 1
        %v533 = vsub.s32 0, %v532
        %v534 = vsel %vm528, %v533, %v532
        %vm535 = vcmp.ne.s32.totalorder %v527, 0
        %vm536 = vcmp.ne.s32.totalorder %v534, 0
        %vm537 = vcmp.lt.s32.totalorder %v527, 0
        %vm538 = vcmp.lt.s32.totalorder %v534, 0
        %vm539 = vmand %vm537, %vm535
        %vm540 = vmand %vm538, %vm536
        %v541 = vadd.s32 %v527, 2
        %v542 = vadd.s32 %v534, 2
        %v543 = vsel %vm539, %v541, %v527
        %v544 = vsel %vm540, %v542, %v534
        %vm545 = vcmp.eq.s32.totalorder %v543, 1
        %vm546 = vcmp.eq.s32.totalorder %v544, 1
        %v547 = vld [vmem:[%s3] sm:$0xff]
        %v548 = vld [vmem:[%s3 + $0x8] sm:$0xff]
        %v549 = vld [vmem:[%s3 + $0x10] sm:$0xff]
        %v550 = vld [vmem:[%s3 + $0x18] sm:$0xff]
        %vm551 = vcmask 261120
        %v553 = vsel %vm551, %v484, 0
        %v556 = vsel %vm551, %v485, 0
        %558 = vmatprep.subr.mxu0 0.0
        %559 = vmatpush1.msra.mxu0 0.0
        %560 = vmatprep.subr.mxu0 0.0
        %561 = vmatpush1.msra.mxu0 0.0
        %562 = vmatprep.subr.mxu0 0.0
        %563 = vmatpush1.msra.mxu0 0.0
        %564 = vmatprep.subr.mxu0 0.0
        %565 = vmatpush1.msra.mxu0 0.0
        %566 = vmatprep.subr.mxu0 0.0
        %567 = vmatpush1.msra.mxu0 0.0
        %568 = vmatprep.subr.mxu0 0.0
        %569 = vmatpush1.msra.mxu0 0.0
        %570 = vmatprep.subr.mxu0 0.0
        %571 = vmatpush1.msra.mxu0 0.0
        %572 = vmatprep.subr.mxu0 0.0
        %573 = vmatpush1.msra.mxu0 0.0
        %574 = vmatprep.subr.mxu0 0.0
        %575 = vmatpush1.msra.mxu0 0.0
        %576 = vmatprep.subr.mxu0 0.0
        %577 = vmatpush1.msra.mxu0 0.0
        %578 = vmatprep.subr.mxu0 0.0
        %579 = vmatpush1.msra.mxu0 0.0
        %580 = vmatprep.subr.mxu0 0.0
        %581 = vmatpush1.msra.mxu0 0.0
        %582 = vmatprep.subr.mxu0 0.0
        %583 = vmatpush1.msra.mxu0 %v550
        %584 = vmatprep.subr.mxu0 0.0
        %585 = vmatpush1.msra.mxu0 %v549
        %586 = vmatprep.subr.mxu0 0.0
        %587 = vmatpush1.msra.mxu0 %v548
        %588 = vmatprep.subr.mxu0 0.0
        %589 = vmatpush1.msra.mxu0 %v547
        %590 = vmatprep.subr.mxu0 0.0
        %591 = vmatpush2.msra.mxu0 0.0
        %592 = vmatprep.subr.mxu0 0.0
        %593 = vmatpush2.msra.mxu0 0.0
        %594 = vmatprep.subr.mxu0 0.0
        %595 = vmatpush2.msra.mxu0 0.0
        %596 = vmatprep.subr.mxu0 0.0
        %597 = vmatpush2.msra.mxu0 0.0
        %598 = vmatprep.subr.mxu0 0.0
        %599 = vmatpush2.msra.mxu0 0.0
        %600 = vmatprep.subr.mxu0 0.0
        %601 = vmatpush2.msra.mxu0 0.0
        %602 = vmatprep.subr.mxu0 0.0
        %603 = vmatpush2.msra.mxu0 0.0
        %604 = vmatprep.subr.mxu0 0.0
        %605 = vmatpush2.msra.mxu0 0.0
        %606 = vmatprep.subr.mxu0 0.0
        %607 = vmatpush2.msra.mxu0 0.0
        %608 = vmatprep.subr.mxu0 0.0
        %609 = vmatpush2.msra.mxu0 0.0
        %610 = vmatprep.subr.mxu0 0.0
        %611 = vmatpush2.msra.mxu0 0.0
        %612 = vmatprep.subr.mxu0 0.0
        %613 = vmatpush2.msra.mxu0 0.0
        %614 = vmatprep.subr.mxu0 0.0
        %615 = vmatpush2.msra.mxu0 0.0
        %616 = vmatprep.subr.mxu0 0.0
        %617 = vmatpush2.msra.mxu0 0.0
        %618 = vmatprep.subr.mxu0 0.0
        %619 = vmatpush2.msra.mxu0 0.0
        %620 = vmatprep.subr.mxu0 0.0
        %621 = vmatpush2.msra.mxu0 0.0
        %622 = vmatprep.mubr.f32.mxu0 0.0
        %623 = vmatmul.mubr.f32.gmra.mxu0 %v553
        %v624 = vpop.f32.mrf.mxu0
        %v625 = vadd.f32 0.0, %v624
        %v626 = vpop.f32.mrf.mxu0
        %627 = vmatprep.mubr.f32.mxu0 0.0
        %628 = vmatmul.mubr.f32.gmra.mxu0 %v556
        %v629 = vpop.f32.mrf.mxu0
        %v630 = vadd.f32 0.0, %v629
        %v631 = vpop.f32.mrf.mxu0
        %632 = vdwg.mxu0
        %v633 = vld [vmem:[#allocation9] sm:$0xff]
        %v634 = vld [vmem:[#allocation9 + $0x8] sm:$0xff]
        %v635 = vld [vmem:[#allocation9 + $0x10] sm:$0xff]
        %v636 = vld [vmem:[#allocation9 + $0x18] sm:$0xff]
        %v638 = vsel %vm551, %v488, 0
        %v641 = vsel %vm551, %v489, 0
        %643 = vmatprep.subr.mxu0 0.0
        %644 = vmatpush1.msra.mxu0 0.0
        %645 = vmatprep.subr.mxu0 0.0
        %646 = vmatpush1.msra.mxu0 0.0
        %647 = vmatprep.subr.mxu0 0.0
        %648 = vmatpush1.msra.mxu0 0.0
        %649 = vmatprep.subr.mxu0 0.0
        %650 = vmatpush1.msra.mxu0 0.0
        %651 = vmatprep.subr.mxu0 0.0
        %652 = vmatpush1.msra.mxu0 0.0
        %653 = vmatprep.subr.mxu0 0.0
        %654 = vmatpush1.msra.mxu0 0.0
        %655 = vmatprep.subr.mxu0 0.0
        %656 = vmatpush1.msra.mxu0 0.0
        %657 = vmatprep.subr.mxu0 0.0
        %658 = vmatpush1.msra.mxu0 0.0
        %659 = vmatprep.subr.mxu0 0.0
        %660 = vmatpush1.msra.mxu0 0.0
        %661 = vmatprep.subr.mxu0 0.0
        %662 = vmatpush1.msra.mxu0 0.0
        %663 = vmatprep.subr.mxu0 0.0
        %664 = vmatpush1.msra.mxu0 0.0
        %665 = vmatprep.subr.mxu0 0.0
        %666 = vmatpush1.msra.mxu0 0.0
        %667 = vmatprep.subr.mxu0 0.0
        %668 = vmatpush1.msra.mxu0 %v636
        %669 = vmatprep.subr.mxu0 0.0
        %670 = vmatpush1.msra.mxu0 %v635
        %671 = vmatprep.subr.mxu0 0.0
        %672 = vmatpush1.msra.mxu0 %v634
        %673 = vmatprep.subr.mxu0 0.0
        %674 = vmatpush1.msra.mxu0 %v633
        %675 = vmatprep.subr.mxu0 0.0
        %676 = vmatpush2.msra.mxu0 0.0
        %677 = vmatprep.subr.mxu0 0.0
        %678 = vmatpush2.msra.mxu0 0.0
        %679 = vmatprep.subr.mxu0 0.0
        %680 = vmatpush2.msra.mxu0 0.0
        %681 = vmatprep.subr.mxu0 0.0
        %682 = vmatpush2.msra.mxu0 0.0
        %683 = vmatprep.subr.mxu0 0.0
        %684 = vmatpush2.msra.mxu0 0.0
        %685 = vmatprep.subr.mxu0 0.0
        %686 = vmatpush2.msra.mxu0 0.0
        %687 = vmatprep.subr.mxu0 0.0
        %688 = vmatpush2.msra.mxu0 0.0
        %689 = vmatprep.subr.mxu0 0.0
        %690 = vmatpush2.msra.mxu0 0.0
        %691 = vmatprep.subr.mxu0 0.0
        %692 = vmatpush2.msra.mxu0 0.0
        %693 = vmatprep.subr.mxu0 0.0
        %694 = vmatpush2.msra.mxu0 0.0
        %695 = vmatprep.subr.mxu0 0.0
        %696 = vmatpush2.msra.mxu0 0.0
        %697 = vmatprep.subr.mxu0 0.0
        %698 = vmatpush2.msra.mxu0 0.0
        %699 = vmatprep.subr.mxu0 0.0
        %700 = vmatpush2.msra.mxu0 0.0
        %701 = vmatprep.subr.mxu0 0.0
        %702 = vmatpush2.msra.mxu0 0.0
        %703 = vmatprep.subr.mxu0 0.0
        %704 = vmatpush2.msra.mxu0 0.0
        %705 = vmatprep.subr.mxu0 0.0
        %706 = vmatpush2.msra.mxu0 0.0
        %707 = vmatprep.mubr.f32.mxu0 0.0
        %708 = vmatmul.mubr.f32.gmra.mxu0 %v638
        %v709 = vpop.f32.mrf.mxu0
        %v710 = vadd.f32 0.0, %v709
        %v711 = vpop.f32.mrf.mxu0
        %712 = vmatprep.mubr.f32.mxu0 0.0
        %713 = vmatmul.mubr.f32.gmra.mxu0 %v641
        %v714 = vpop.f32.mrf.mxu0
        %v715 = vadd.f32 0.0, %v714
        %v716 = vpop.f32.mrf.mxu0
        %717 = vdwg.mxu0
        %v718 = vld [vmem:[#allocation7] sm:$0xff]
        %v719 = vld [vmem:[#allocation7 + $0x8] sm:$0xff]
        %v720 = vld [vmem:[#allocation7 + $0x10] sm:$0xff]
        %v721 = vld [vmem:[#allocation7 + $0x18] sm:$0xff]
        %722 = vmatprep.subr.mxu0 0.0
        %723 = vmatpush1.msra.mxu0 0.0
        %724 = vmatprep.subr.mxu0 0.0
        %725 = vmatpush1.msra.mxu0 0.0
        %726 = vmatprep.subr.mxu0 0.0
        %727 = vmatpush1.msra.mxu0 0.0
        %728 = vmatprep.subr.mxu0 0.0
        %729 = vmatpush1.msra.mxu0 0.0
        %730 = vmatprep.subr.mxu0 0.0
        %731 = vmatpush1.msra.mxu0 0.0
        %732 = vmatprep.subr.mxu0 0.0
        %733 = vmatpush1.msra.mxu0 0.0
        %734 = vmatprep.subr.mxu0 0.0
        %735 = vmatpush1.msra.mxu0 0.0
        %736 = vmatprep.subr.mxu0 0.0
        %737 = vmatpush1.msra.mxu0 0.0
        %738 = vmatprep.subr.mxu0 0.0
        %739 = vmatpush1.msra.mxu0 0.0
        %740 = vmatprep.subr.mxu0 0.0
        %741 = vmatpush1.msra.mxu0 0.0
        %742 = vmatprep.subr.mxu0 0.0
        %743 = vmatpush1.msra.mxu0 0.0
        %744 = vmatprep.subr.mxu0 0.0
        %745 = vmatpush1.msra.mxu0 0.0
        %746 = vmatprep.subr.mxu0 0.0
        %747 = vmatpush1.msra.mxu0 %v721
        %748 = vmatprep.subr.mxu0 0.0
        %749 = vmatpush1.msra.mxu0 %v720
        %750 = vmatprep.subr.mxu0 0.0
        %751 = vmatpush1.msra.mxu0 %v719
        %752 = vmatprep.subr.mxu0 0.0
        %753 = vmatpush1.msra.mxu0 %v718
        %754 = vmatprep.subr.mxu0 0.0
        %755 = vmatpush2.msra.mxu0 0.0
        %756 = vmatprep.subr.mxu0 0.0
        %757 = vmatpush2.msra.mxu0 0.0
        %758 = vmatprep.subr.mxu0 0.0
        %759 = vmatpush2.msra.mxu0 0.0
        %760 = vmatprep.subr.mxu0 0.0
        %761 = vmatpush2.msra.mxu0 0.0
        %762 = vmatprep.subr.mxu0 0.0
        %763 = vmatpush2.msra.mxu0 0.0
        %764 = vmatprep.subr.mxu0 0.0
        %765 = vmatpush2.msra.mxu0 0.0
        %766 = vmatprep.subr.mxu0 0.0
        %767 = vmatpush2.msra.mxu0 0.0
        %768 = vmatprep.subr.mxu0 0.0
        %769 = vmatpush2.msra.mxu0 0.0
        %770 = vmatprep.subr.mxu0 0.0
        %771 = vmatpush2.msra.mxu0 0.0
        %772 = vmatprep.subr.mxu0 0.0
        %773 = vmatpush2.msra.mxu0 0.0
        %774 = vmatprep.subr.mxu0 0.0
        %775 = vmatpush2.msra.mxu0 0.0
        %776 = vmatprep.subr.mxu0 0.0
        %777 = vmatpush2.msra.mxu0 0.0
        %778 = vmatprep.subr.mxu0 0.0
        %779 = vmatpush2.msra.mxu0 0.0
        %780 = vmatprep.subr.mxu0 0.0
        %781 = vmatpush2.msra.mxu0 0.0
        %782 = vmatprep.subr.mxu0 0.0
        %783 = vmatpush2.msra.mxu0 0.0
        %784 = vmatprep.subr.mxu0 0.0
        %785 = vmatpush2.msra.mxu0 0.0
        %786 = vmatprep.mubr.f32.mxu0 0.0
        %787 = vmatmul.mubr.f32.gmra.mxu0 %v638
        %v788 = vpop.f32.mrf.mxu0
        %v789 = vadd.f32 0.0, %v788
        %v790 = vpop.f32.mrf.mxu0
        %791 = vmatprep.mubr.f32.mxu0 0.0
        %792 = vmatmul.mubr.f32.gmra.mxu0 %v641
        %v793 = vpop.f32.mrf.mxu0
        %v794 = vadd.f32 0.0, %v793
        %v795 = vpop.f32.mrf.mxu0
        %796 = vdwg.mxu0
        %v797 = vsel %vm545, 1, 0
        %v798 = vsel %vm546, 1, 0
        %vm799 = vcmp.eq.s32.totalorder %v797, 1
        %vm800 = vcmp.eq.s32.totalorder %v798, 1
        %v801 = vsel %vm799, %v710, %v789
        %v802 = vsel %vm800, %v715, %v794
        %v803 = vrot.slane %v480, 7
        %v804 = vrot.slane %v625, 7
        %v805 = vrot.slane %v801, 7
        %v806 = vrot.slane %v481, 7
        %v807 = vrot.slane %v630, 7
        %v808 = vrot.slane %v802, 7
        %vm809 = vcmp.lt.s32.totalorder %v491, 1
        %v810 = vsel %vm809, %v803, %v806
        %v811 = vsel %vm809, %v804, %v807
        %v812 = vsel %vm809, %v805, %v808
        %v813 = vsel %vm809, %v806, %v803
        %v814 = vsel %vm809, %v807, %v804
        %v815 = vsel %vm809, %v808, %v805
        %v816 = vsel %vm517, 1, 0
        %v817 = vsel %vm518, 1, 0
        %vm818 = vcmp.eq.s32.totalorder %v816, 1
        %vm819 = vcmp.eq.s32.totalorder %v817, 1
        %v820 = vsel %vm818, %v813, 0.0
        %v821 = vsel %vm818, %v814, 0.0
        %v822 = vsel %vm818, %v815, 0.0
        %v823 = vsel %vm819, %v810, 0.0
        %v824 = vsel %vm819, %v811, 0.0
        %v825 = vsel %vm819, %v812, 0.0
        %v826 = vrot.slane %v480, 1
        %v827 = vrot.slane %v625, 1
        %v828 = vrot.slane %v801, 1
        %v829 = vrot.slane %v481, 1
        %v830 = vrot.slane %v630, 1
        %v831 = vrot.slane %v802, 1
        %vm832 = vcmp.lt.s32.totalorder %v491, 7
        %v833 = vsel %vm832, %v826, %v829
        %v834 = vsel %vm832, %v827, %v830
        %v835 = vsel %vm832, %v828, %v831
        %v836 = vsel %vm832, %v829, %v826
        %v837 = vsel %vm832, %v830, %v827
        %v838 = vsel %vm832, %v831, %v828
        %v839 = vsel %vm519, 1, 0
        %v840 = vsel %vm520, 1, 0
        %vm841 = vcmp.eq.s32.totalorder %v839, 1
        %vm842 = vcmp.eq.s32.totalorder %v840, 1
        %v843 = vsel %vm841, %v833, 0.0
        %v844 = vsel %vm841, %v834, 0.0
        %v845 = vsel %vm841, %v835, 0.0
        %v846 = vsel %vm842, %v836, 0.0
        %v847 = vsel %vm842, %v837, 0.0
        %v848 = vsel %vm842, %v838, 0.0
        %v849 = vld [vmem:[#allocation10] sm:$0xff]
        %v850 = vld [vmem:[#allocation10 + $0x8] sm:$0xff]
        %v851 = vld [vmem:[#allocation10 + $0x10] sm:$0xff]
        %v852 = vld [vmem:[#allocation10 + $0x18] sm:$0xff]
        %v853 = vld [vmem:[#allocation10 + $0x20] sm:$0xff]
        %v854 = vld [vmem:[#allocation10 + $0x28] sm:$0xff]
        %v855 = vld [vmem:[#allocation10 + $0x30] sm:$0xff]
        %v856 = vld [vmem:[#allocation10 + $0x38] sm:$0xff]
        %v857 = vld [vmem:[#allocation10 + $0x40] sm:$0xff]
        %v858 = vld [vmem:[#allocation10 + $0x48] sm:$0xff]
        %v859 = vld [vmem:[#allocation10 + $0x50] sm:$0xff]
        %v860 = vld [vmem:[#allocation10 + $0x58] sm:$0xff]
        %v861 = vld [vmem:[#allocation10 + $0x60] sm:$0xff]
        %v862 = vld [vmem:[#allocation10 + $0x68] sm:$0xff]
        %v863 = vld [vmem:[#allocation10 + $0x70] sm:$0xff]
        %v864 = vld [vmem:[#allocation10 + $0x78] sm:$0xff]
        %v865 = vld [vmem:[#allocation10 + $0x80] sm:$0xff]
        %v866 = vld [vmem:[#allocation10 + $0x88] sm:$0xff]
        %v867 = vld [vmem:[#allocation10 + $0x90] sm:$0xff]
        %v868 = vld [vmem:[#allocation10 + $0x98] sm:$0xff]
        %v869 = vld [vmem:[#allocation10 + $0xa0] sm:$0xff]
        %v870 = vld [vmem:[#allocation10 + $0xa8] sm:$0xff]
        %v871 = vld [vmem:[#allocation10 + $0xb0] sm:$0xff]
        %v872 = vld [vmem:[#allocation10 + $0xb8] sm:$0xff]
        %v873 = vld [vmem:[#allocation10 + $0xc0] sm:$0xff]
        %v874 = vld [vmem:[#allocation10 + $0xc8] sm:$0xff]
        %v875 = vld [vmem:[#allocation10 + $0xd0] sm:$0xff]
        %v876 = vld [vmem:[#allocation10 + $0xd8] sm:$0xff]
        %v877 = vld [vmem:[#allocation10 + $0xe0] sm:$0xff]
        %v878 = vld [vmem:[#allocation10 + $0xe8] sm:$0xff]
        %v879 = vld [vmem:[#allocation10 + $0xf0] sm:$0xff]
        %v880 = vld [vmem:[#allocation10 + $0xf8] sm:$0xff]
        %v881 = vld [vmem:[#allocation10 + $0x100] sm:$0xff]
        %v882 = vld [vmem:[#allocation10 + $0x108] sm:$0xff]
        %v883 = vld [vmem:[#allocation10 + $0x110] sm:$0xff]
        %v884 = vld [vmem:[#allocation10 + $0x118] sm:$0xff]
        %v885 = vld [vmem:[#allocation10 + $0x120] sm:$0xff]
        %v886 = vld [vmem:[#allocation10 + $0x128] sm:$0xff]
        %v887 = vld [vmem:[#allocation10 + $0x130] sm:$0xff]
        %v888 = vld [vmem:[#allocation10 + $0x138] sm:$0xff]
        %v889 = vld [vmem:[#allocation10 + $0x140] sm:$0xff]
        %v890 = vld [vmem:[#allocation10 + $0x148] sm:$0xff]
        %v891 = vld [vmem:[#allocation10 + $0x150] sm:$0xff]
        %v892 = vld [vmem:[#allocation10 + $0x158] sm:$0xff]
        %v893 = vld [vmem:[#allocation10 + $0x160] sm:$0xff]
        %v894 = vld [vmem:[#allocation10 + $0x168] sm:$0xff]
        %v895 = vld [vmem:[#allocation10 + $0x170] sm:$0xff]
        %v896 = vld [vmem:[#allocation10 + $0x178] sm:$0xff]
        %v897 = vld [vmem:[#allocation10 + $0x180] sm:$0xff]
        %v898 = vld [vmem:[#allocation10 + $0x188] sm:$0xff]
        %v899 = vld [vmem:[#allocation10 + $0x190] sm:$0xff]
        %v900 = vld [vmem:[#allocation10 + $0x198] sm:$0xff]
        %v901 = vld [vmem:[#allocation10 + $0x1a0] sm:$0xff]
        %v902 = vld [vmem:[#allocation10 + $0x1a8] sm:$0xff]
        %v903 = vld [vmem:[#allocation10 + $0x1b0] sm:$0xff]
        %v904 = vld [vmem:[#allocation10 + $0x1b8] sm:$0xff]
        %v905 = vld [vmem:[#allocation10 + $0x1c0] sm:$0xff]
        %v906 = vld [vmem:[#allocation10 + $0x1c8] sm:$0xff]
        %v907 = vld [vmem:[#allocation10 + $0x1d0] sm:$0xff]
        %v908 = vld [vmem:[#allocation10 + $0x1d8] sm:$0xff]
        %v909 = vld [vmem:[#allocation10 + $0x1e0] sm:$0xff]
        %v910 = vld [vmem:[#allocation10 + $0x1e8] sm:$0xff]
        %v911 = vld [vmem:[#allocation10 + $0x1f0] sm:$0xff]
        %v912 = vld [vmem:[#allocation10 + $0x1f8] sm:$0xff]
        %v913 = vld [vmem:[#allocation10 + $0x200] sm:$0xff]
        %v914 = vld [vmem:[#allocation10 + $0x208] sm:$0xff]
        %v915 = vld [vmem:[#allocation10 + $0x210] sm:$0xff]
        %v916 = vld [vmem:[#allocation10 + $0x218] sm:$0xff]
        %v917 = vld [vmem:[#allocation10 + $0x220] sm:$0xff]
        %v918 = vld [vmem:[#allocation10 + $0x228] sm:$0xff]
        %v919 = vld [vmem:[#allocation10 + $0x230] sm:$0xff]
        %v920 = vld [vmem:[#allocation10 + $0x238] sm:$0xff]
        %v921 = vld [vmem:[#allocation10 + $0x240] sm:$0xff]
        %v922 = vld [vmem:[#allocation10 + $0x248] sm:$0xff]
        %v923 = vld [vmem:[#allocation10 + $0x250] sm:$0xff]
        %v924 = vld [vmem:[#allocation10 + $0x258] sm:$0xff]
        %v925 = vld [vmem:[#allocation10 + $0x260] sm:$0xff]
        %v926 = vld [vmem:[#allocation10 + $0x268] sm:$0xff]
        %v927 = vld [vmem:[#allocation10 + $0x270] sm:$0xff]
        %v928 = vld [vmem:[#allocation10 + $0x278] sm:$0xff]
        %v929 = vld [vmem:[#allocation10 + $0x280] sm:$0xff]
        %v930 = vld [vmem:[#allocation10 + $0x288] sm:$0xff]
        %v931 = vld [vmem:[#allocation10 + $0x290] sm:$0xff]
        %v932 = vld [vmem:[#allocation10 + $0x298] sm:$0xff]
        %v933 = vld [vmem:[#allocation10 + $0x2a0] sm:$0xff]
        %v934 = vld [vmem:[#allocation10 + $0x2a8] sm:$0xff]
        %v935 = vld [vmem:[#allocation10 + $0x2b0] sm:$0xff]
        %v936 = vld [vmem:[#allocation10 + $0x2b8] sm:$0xff]
        %v937 = vld [vmem:[#allocation10 + $0x2c0] sm:$0xff]
        %v938 = vld [vmem:[#allocation10 + $0x2c8] sm:$0xff]
        %v939 = vld [vmem:[#allocation10 + $0x2d0] sm:$0xff]
        %v940 = vld [vmem:[#allocation10 + $0x2d8] sm:$0xff]
        %v941 = vld [vmem:[#allocation10 + $0x2e0] sm:$0xff]
        %v942 = vld [vmem:[#allocation10 + $0x2e8] sm:$0xff]
        %v943 = vld [vmem:[#allocation10 + $0x2f0] sm:$0xff]
        %v944 = vld [vmem:[#allocation10 + $0x2f8] sm:$0xff]
        %v945 = vld [vmem:[#allocation10 + $0x300] sm:$0xff]
        %v946 = vld [vmem:[#allocation10 + $0x308] sm:$0xff]
        %v947 = vld [vmem:[#allocation10 + $0x310] sm:$0xff]
        %v948 = vld [vmem:[#allocation10 + $0x318] sm:$0xff]
        %v949 = vld [vmem:[#allocation10 + $0x320] sm:$0xff]
        %v950 = vld [vmem:[#allocation10 + $0x328] sm:$0xff]
        %v951 = vld [vmem:[#allocation10 + $0x330] sm:$0xff]
        %v952 = vld [vmem:[#allocation10 + $0x338] sm:$0xff]
        %v953 = vld [vmem:[#allocation10 + $0x340] sm:$0xff]
        %v954 = vld [vmem:[#allocation10 + $0x348] sm:$0xff]
        %v955 = vld [vmem:[#allocation10 + $0x350] sm:$0xff]
        %v956 = vld [vmem:[#allocation10 + $0x358] sm:$0xff]
        %v957 = vld [vmem:[#allocation10 + $0x360] sm:$0xff]
        %v958 = vld [vmem:[#allocation10 + $0x368] sm:$0xff]
        %v959 = vld [vmem:[#allocation10 + $0x370] sm:$0xff]
        %v960 = vld [vmem:[#allocation10 + $0x378] sm:$0xff]
        %v961 = vld [vmem:[#allocation10 + $0x380] sm:$0xff]
        %v962 = vld [vmem:[#allocation10 + $0x388] sm:$0xff]
        %v963 = vld [vmem:[#allocation10 + $0x390] sm:$0xff]
        %v964 = vld [vmem:[#allocation10 + $0x398] sm:$0xff]
        %v965 = vld [vmem:[#allocation10 + $0x3a0] sm:$0xff]
        %v966 = vld [vmem:[#allocation10 + $0x3a8] sm:$0xff]
        %v967 = vld [vmem:[#allocation10 + $0x3b0] sm:$0xff]
        %v968 = vld [vmem:[#allocation10 + $0x3b8] sm:$0xff]
        %v969 = vld [vmem:[#allocation10 + $0x3c0] sm:$0xff]
        %v970 = vld [vmem:[#allocation10 + $0x3c8] sm:$0xff]
        %v971 = vld [vmem:[#allocation10 + $0x3d0] sm:$0xff]
        %v972 = vld [vmem:[#allocation10 + $0x3d8] sm:$0xff]
        %v973 = vld [vmem:[#allocation10 + $0x3e0] sm:$0xff]
        %v974 = vld [vmem:[#allocation10 + $0x3e8] sm:$0xff]
        %v975 = vld [vmem:[#allocation10 + $0x3f0] sm:$0xff]
        %v976 = vld [vmem:[#allocation10 + $0x3f8] sm:$0xff]
        %v977 = vld [vmem:[#allocation10 + $0x400] sm:$0xff]
        %v978 = vld [vmem:[#allocation10 + $0x408] sm:$0xff]
        %v979 = vld [vmem:[#allocation10 + $0x410] sm:$0xff]
        %v980 = vld [vmem:[#allocation10 + $0x418] sm:$0xff]
        %v981 = vld [vmem:[#allocation10 + $0x420] sm:$0xff]
        %v982 = vld [vmem:[#allocation10 + $0x428] sm:$0xff]
        %v983 = vld [vmem:[#allocation10 + $0x430] sm:$0xff]
        %v984 = vld [vmem:[#allocation10 + $0x438] sm:$0xff]
        %v985 = vld [vmem:[#allocation10 + $0x440] sm:$0xff]
        %v986 = vld [vmem:[#allocation10 + $0x448] sm:$0xff]
        %v987 = vld [vmem:[#allocation10 + $0x450] sm:$0xff]
        %v988 = vld [vmem:[#allocation10 + $0x458] sm:$0xff]
        %v989 = vld [vmem:[#allocation10 + $0x460] sm:$0xff]
        %v990 = vld [vmem:[#allocation10 + $0x468] sm:$0xff]
        %v991 = vld [vmem:[#allocation10 + $0x470] sm:$0xff]
        %v992 = vld [vmem:[#allocation10 + $0x478] sm:$0xff]
        %993 = vmatprep.subr.mxu0 0.0
        %994 = vmatpush1.msra.mxu0 %v864
        %995 = vmatprep.subr.mxu0 0.0
        %996 = vmatpush1.msra.mxu0 %v863
        %997 = vmatprep.subr.mxu0 0.0
        %998 = vmatpush1.msra.mxu0 %v862
        %999 = vmatprep.subr.mxu0 0.0
        %1000 = vmatpush1.msra.mxu0 %v861
        %1001 = vmatprep.subr.mxu0 0.0
        %1002 = vmatpush1.msra.mxu0 %v860
        %1003 = vmatprep.subr.mxu0 0.0
        %1004 = vmatpush1.msra.mxu0 %v859
        %1005 = vmatprep.subr.mxu0 0.0
        %1006 = vmatpush1.msra.mxu0 %v858
        %1007 = vmatprep.subr.mxu0 0.0
        %1008 = vmatpush1.msra.mxu0 %v857
        %1009 = vmatprep.subr.mxu0 0.0
        %1010 = vmatpush1.msra.mxu0 %v856
        %1011 = vmatprep.subr.mxu0 0.0
        %1012 = vmatpush1.msra.mxu0 %v855
        %1013 = vmatprep.subr.mxu0 0.0
        %1014 = vmatpush1.msra.mxu0 %v854
        %1015 = vmatprep.subr.mxu0 0.0
        %1016 = vmatpush1.msra.mxu0 %v853
        %1017 = vmatprep.subr.mxu0 0.0
        %1018 = vmatpush1.msra.mxu0 %v852
        %1019 = vmatprep.subr.mxu0 0.0
        %1020 = vmatpush1.msra.mxu0 %v851
        %1021 = vmatprep.subr.mxu0 0.0
        %1022 = vmatpush1.msra.mxu0 %v850
        %1023 = vmatprep.subr.mxu0 0.0
        %1024 = vmatpush1.msra.mxu0 %v849
        %1025 = vmatprep.subr.mxu0 0.0
        %1026 = vmatpush2.msra.mxu0 %v880
        %1027 = vmatprep.subr.mxu0 0.0
        %1028 = vmatpush2.msra.mxu0 %v879
        %1029 = vmatprep.subr.mxu0 0.0
        %1030 = vmatpush2.msra.mxu0 %v878
        %1031 = vmatprep.subr.mxu0 0.0
        %1032 = vmatpush2.msra.mxu0 %v877
        %1033 = vmatprep.subr.mxu0 0.0
        %1034 = vmatpush2.msra.mxu0 %v876
        %1035 = vmatprep.subr.mxu0 0.0
        %1036 = vmatpush2.msra.mxu0 %v875
        %1037 = vmatprep.subr.mxu0 0.0
        %1038 = vmatpush2.msra.mxu0 %v874
        %1039 = vmatprep.subr.mxu0 0.0
        %1040 = vmatpush2.msra.mxu0 %v873
        %1041 = vmatprep.subr.mxu0 0.0
        %1042 = vmatpush2.msra.mxu0 %v872
        %1043 = vmatprep.subr.mxu0 0.0
        %1044 = vmatpush2.msra.mxu0 %v871
        %1045 = vmatprep.subr.mxu0 0.0
        %1046 = vmatpush2.msra.mxu0 %v870
        %1047 = vmatprep.subr.mxu0 0.0
        %1048 = vmatpush2.msra.mxu0 %v869
        %1049 = vmatprep.subr.mxu0 0.0
        %1050 = vmatpush2.msra.mxu0 %v868
        %1051 = vmatprep.subr.mxu0 0.0
        %1052 = vmatpush2.msra.mxu0 %v867
        %1053 = vmatprep.subr.mxu0 0.0
        %1054 = vmatpush2.msra.mxu0 %v866
        %1055 = vmatprep.subr.mxu0 0.0
        %1056 = vmatpush2.msra.mxu0 %v865
        %1057 = vmatprep.mubr.f32.mxu0 %v821
        %1058 = vmatmul.mubr.f32.gmra.mxu0 %v820
        %v1059 = vpop.f32.mrf.mxu0
        %v1060 = vadd.f32 0.0, %v1059
        %v1061 = vpop.f32.mrf.mxu0
        %1062 = vmatprep.mubr.f32.mxu0 %v824
        %1063 = vmatmul.mubr.f32.gmra.mxu0 %v823
        %v1064 = vpop.f32.mrf.mxu0
        %v1065 = vadd.f32 0.0, %v1064
        %v1066 = vpop.f32.mrf.mxu0
        %1067 = vdwg.mxu0
        %1068 = vmatprep.subr.mxu0 0.0
        %1069 = vmatpush1.msra.mxu0 %v896
        %1070 = vmatprep.subr.mxu0 0.0
        %1071 = vmatpush1.msra.mxu0 %v895
        %1072 = vmatprep.subr.mxu0 0.0
        %1073 = vmatpush1.msra.mxu0 %v894
        %1074 = vmatprep.subr.mxu0 0.0
        %1075 = vmatpush1.msra.mxu0 %v893
        %1076 = vmatprep.subr.mxu0 0.0
        %1077 = vmatpush1.msra.mxu0 %v892
        %1078 = vmatprep.subr.mxu0 0.0
        %1079 = vmatpush1.msra.mxu0 %v891
        %1080 = vmatprep.subr.mxu0 0.0
        %1081 = vmatpush1.msra.mxu0 %v890
        %1082 = vmatprep.subr.mxu0 0.0
        %1083 = vmatpush1.msra.mxu0 %v889
        %1084 = vmatprep.subr.mxu0 0.0
        %1085 = vmatpush1.msra.mxu0 %v888
        %1086 = vmatprep.subr.mxu0 0.0
        %1087 = vmatpush1.msra.mxu0 %v887
        %1088 = vmatprep.subr.mxu0 0.0
        %1089 = vmatpush1.msra.mxu0 %v886
        %1090 = vmatprep.subr.mxu0 0.0
        %1091 = vmatpush1.msra.mxu0 %v885
        %1092 = vmatprep.subr.mxu0 0.0
        %1093 = vmatpush1.msra.mxu0 %v884
        %1094 = vmatprep.subr.mxu0 0.0
        %1095 = vmatpush1.msra.mxu0 %v883
        %1096 = vmatprep.subr.mxu0 0.0
        %1097 = vmatpush1.msra.mxu0 %v882
        %1098 = vmatprep.subr.mxu0 0.0
        %1099 = vmatpush1.msra.mxu0 %v881
        %1100 = vmatprep.subr.mxu0 0.0
        %1101 = vmatpush2.msra.mxu0 %v912
        %1102 = vmatprep.subr.mxu0 0.0
        %1103 = vmatpush2.msra.mxu0 %v911
        %1104 = vmatprep.subr.mxu0 0.0
        %1105 = vmatpush2.msra.mxu0 %v910
        %1106 = vmatprep.subr.mxu0 0.0
        %1107 = vmatpush2.msra.mxu0 %v909
        %1108 = vmatprep.subr.mxu0 0.0
        %1109 = vmatpush2.msra.mxu0 %v908
        %1110 = vmatprep.subr.mxu0 0.0
        %1111 = vmatpush2.msra.mxu0 %v907
        %1112 = vmatprep.subr.mxu0 0.0
        %1113 = vmatpush2.msra.mxu0 %v906
        %1114 = vmatprep.subr.mxu0 0.0
        %1115 = vmatpush2.msra.mxu0 %v905
        %1116 = vmatprep.subr.mxu0 0.0
        %1117 = vmatpush2.msra.mxu0 %v904
        %1118 = vmatprep.subr.mxu0 0.0
        %1119 = vmatpush2.msra.mxu0 %v903
        %1120 = vmatprep.subr.mxu0 0.0
        %1121 = vmatpush2.msra.mxu0 %v902
        %1122 = vmatprep.subr.mxu0 0.0
        %1123 = vmatpush2.msra.mxu0 %v901
        %1124 = vmatprep.subr.mxu0 0.0
        %1125 = vmatpush2.msra.mxu0 %v900
        %1126 = vmatprep.subr.mxu0 0.0
        %1127 = vmatpush2.msra.mxu0 %v899
        %1128 = vmatprep.subr.mxu0 0.0
        %1129 = vmatpush2.msra.mxu0 %v898
        %1130 = vmatprep.subr.mxu0 0.0
        %1131 = vmatpush2.msra.mxu0 %v897
        %1132 = vmatprep.mubr.f32.mxu0 %v480
        %1133 = vmatmul.mubr.f32.gmra.mxu0 %v822
        %v1134 = vpop.f32.mrf.mxu0
        %v1135 = vadd.f32 %v1060, %v1134
        %v1136 = vpop.f32.mrf.mxu0
        %1137 = vmatprep.mubr.f32.mxu0 %v481
        %1138 = vmatmul.mubr.f32.gmra.mxu0 %v825
        %v1139 = vpop.f32.mrf.mxu0
        %v1140 = vadd.f32 %v1065, %v1139
        %v1141 = vpop.f32.mrf.mxu0
        %1142 = vdwg.mxu0
        %1143 = vmatprep.subr.mxu0 0.0
        %1144 = vmatpush1.msra.mxu0 %v928
        %1145 = vmatprep.subr.mxu0 0.0
        %1146 = vmatpush1.msra.mxu0 %v927
        %1147 = vmatprep.subr.mxu0 0.0
        %1148 = vmatpush1.msra.mxu0 %v926
        %1149 = vmatprep.subr.mxu0 0.0
        %1150 = vmatpush1.msra.mxu0 %v925
        %1151 = vmatprep.subr.mxu0 0.0
        %1152 = vmatpush1.msra.mxu0 %v924
        %1153 = vmatprep.subr.mxu0 0.0
        %1154 = vmatpush1.msra.mxu0 %v923
        %1155 = vmatprep.subr.mxu0 0.0
        %1156 = vmatpush1.msra.mxu0 %v922
        %1157 = vmatprep.subr.mxu0 0.0
        %1158 = vmatpush1.msra.mxu0 %v921
        %1159 = vmatprep.subr.mxu0 0.0
        %1160 = vmatpush1.msra.mxu0 %v920
        %1161 = vmatprep.subr.mxu0 0.0
        %1162 = vmatpush1.msra.mxu0 %v919
        %1163 = vmatprep.subr.mxu0 0.0
        %1164 = vmatpush1.msra.mxu0 %v918
        %1165 = vmatprep.subr.mxu0 0.0
        %1166 = vmatpush1.msra.mxu0 %v917
        %1167 = vmatprep.subr.mxu0 0.0
        %1168 = vmatpush1.msra.mxu0 %v916
        %1169 = vmatprep.subr.mxu0 0.0
        %1170 = vmatpush1.msra.mxu0 %v915
        %1171 = vmatprep.subr.mxu0 0.0
        %1172 = vmatpush1.msra.mxu0 %v914
        %1173 = vmatprep.subr.mxu0 0.0
        %1174 = vmatpush1.msra.mxu0 %v913
        %1175 = vmatprep.subr.mxu0 0.0
        %1176 = vmatpush2.msra.mxu0 %v944
        %1177 = vmatprep.subr.mxu0 0.0
        %1178 = vmatpush2.msra.mxu0 %v943
        %1179 = vmatprep.subr.mxu0 0.0
        %1180 = vmatpush2.msra.mxu0 %v942
        %1181 = vmatprep.subr.mxu0 0.0
        %1182 = vmatpush2.msra.mxu0 %v941
        %1183 = vmatprep.subr.mxu0 0.0
        %1184 = vmatpush2.msra.mxu0 %v940
        %1185 = vmatprep.subr.mxu0 0.0
        %1186 = vmatpush2.msra.mxu0 %v939
        %1187 = vmatprep.subr.mxu0 0.0
        %1188 = vmatpush2.msra.mxu0 %v938
        %1189 = vmatprep.subr.mxu0 0.0
        %1190 = vmatpush2.msra.mxu0 %v937
        %1191 = vmatprep.subr.mxu0 0.0
        %1192 = vmatpush2.msra.mxu0 %v936
        %1193 = vmatprep.subr.mxu0 0.0
        %1194 = vmatpush2.msra.mxu0 %v935
        %1195 = vmatprep.subr.mxu0 0.0
        %1196 = vmatpush2.msra.mxu0 %v934
        %1197 = vmatprep.subr.mxu0 0.0
        %1198 = vmatpush2.msra.mxu0 %v933
        %1199 = vmatprep.subr.mxu0 0.0
        %1200 = vmatpush2.msra.mxu0 %v932
        %1201 = vmatprep.subr.mxu0 0.0
        %1202 = vmatpush2.msra.mxu0 %v931
        %1203 = vmatprep.subr.mxu0 0.0
        %1204 = vmatpush2.msra.mxu0 %v930
        %1205 = vmatprep.subr.mxu0 0.0
        %1206 = vmatpush2.msra.mxu0 %v929
        %1207 = vmatprep.mubr.f32.mxu0 %v801
        %1208 = vmatmul.mubr.f32.gmra.mxu0 %v625
        %v1209 = vpop.f32.mrf.mxu0
        %v1210 = vadd.f32 %v1135, %v1209
        %v1211 = vpop.f32.mrf.mxu0
        %1212 = vmatprep.mubr.f32.mxu0 %v802
        %1213 = vmatmul.mubr.f32.gmra.mxu0 %v630
        %v1214 = vpop.f32.mrf.mxu0
        %v1215 = vadd.f32 %v1140, %v1214
        %v1216 = vpop.f32.mrf.mxu0
        %1217 = vdwg.mxu0
        %1218 = vmatprep.subr.mxu0 0.0
        %1219 = vmatpush1.msra.mxu0 %v960
        %1220 = vmatprep.subr.mxu0 0.0
        %1221 = vmatpush1.msra.mxu0 %v959
        %1222 = vmatprep.subr.mxu0 0.0
        %1223 = vmatpush1.msra.mxu0 %v958
        %1224 = vmatprep.subr.mxu0 0.0
        %1225 = vmatpush1.msra.mxu0 %v957
        %1226 = vmatprep.subr.mxu0 0.0
        %1227 = vmatpush1.msra.mxu0 %v956
        %1228 = vmatprep.subr.mxu0 0.0
        %1229 = vmatpush1.msra.mxu0 %v955
        %1230 = vmatprep.subr.mxu0 0.0
        %1231 = vmatpush1.msra.mxu0 %v954
        %1232 = vmatprep.subr.mxu0 0.0
        %1233 = vmatpush1.msra.mxu0 %v953
        %1234 = vmatprep.subr.mxu0 0.0
        %1235 = vmatpush1.msra.mxu0 %v952
        %1236 = vmatprep.subr.mxu0 0.0
        %1237 = vmatpush1.msra.mxu0 %v951
        %1238 = vmatprep.subr.mxu0 0.0
        %1239 = vmatpush1.msra.mxu0 %v950
        %1240 = vmatprep.subr.mxu0 0.0
        %1241 = vmatpush1.msra.mxu0 %v949
        %1242 = vmatprep.subr.mxu0 0.0
        %1243 = vmatpush1.msra.mxu0 %v948
        %1244 = vmatprep.subr.mxu0 0.0
        %1245 = vmatpush1.msra.mxu0 %v947
        %1246 = vmatprep.subr.mxu0 0.0
        %1247 = vmatpush1.msra.mxu0 %v946
        %1248 = vmatprep.subr.mxu0 0.0
        %1249 = vmatpush1.msra.mxu0 %v945
        %1250 = vmatprep.subr.mxu0 0.0
        %1251 = vmatpush2.msra.mxu0 %v976
        %1252 = vmatprep.subr.mxu0 0.0
        %1253 = vmatpush2.msra.mxu0 %v975
        %1254 = vmatprep.subr.mxu0 0.0
        %1255 = vmatpush2.msra.mxu0 %v974
        %1256 = vmatprep.subr.mxu0 0.0
        %1257 = vmatpush2.msra.mxu0 %v973
        %1258 = vmatprep.subr.mxu0 0.0
        %1259 = vmatpush2.msra.mxu0 %v972
        %1260 = vmatprep.subr.mxu0 0.0
        %1261 = vmatpush2.msra.mxu0 %v971
        %1262 = vmatprep.subr.mxu0 0.0
        %1263 = vmatpush2.msra.mxu0 %v970
        %1264 = vmatprep.subr.mxu0 0.0
        %1265 = vmatpush2.msra.mxu0 %v969
        %1266 = vmatprep.subr.mxu0 0.0
        %1267 = vmatpush2.msra.mxu0 %v968
        %1268 = vmatprep.subr.mxu0 0.0
        %1269 = vmatpush2.msra.mxu0 %v967
        %1270 = vmatprep.subr.mxu0 0.0
        %1271 = vmatpush2.msra.mxu0 %v966
        %1272 = vmatprep.subr.mxu0 0.0
        %1273 = vmatpush2.msra.mxu0 %v965
        %1274 = vmatprep.subr.mxu0 0.0
        %1275 = vmatpush2.msra.mxu0 %v964
        %1276 = vmatprep.subr.mxu0 0.0
        %1277 = vmatpush2.msra.mxu0 %v963
        %1278 = vmatprep.subr.mxu0 0.0
        %1279 = vmatpush2.msra.mxu0 %v962
        %1280 = vmatprep.subr.mxu0 0.0
        %1281 = vmatpush2.msra.mxu0 %v961
        %1282 = vmatprep.mubr.f32.mxu0 %v844
        %1283 = vmatmul.mubr.f32.gmra.mxu0 %v843
        %v1284 = vpop.f32.mrf.mxu0
        %v1285 = vadd.f32 %v1210, %v1284
        %v1286 = vpop.f32.mrf.mxu0
        %1287 = vmatprep.mubr.f32.mxu0 %v847
        %1288 = vmatmul.mubr.f32.gmra.mxu0 %v846
        %v1289 = vpop.f32.mrf.mxu0
        %v1290 = vadd.f32 %v1215, %v1289
        %v1291 = vpop.f32.mrf.mxu0
        %1292 = vdwg.mxu0
        %1293 = vmatprep.subr.mxu0 0.0
        %1294 = vmatpush1.msra.mxu0 %v992
        %1295 = vmatprep.subr.mxu0 0.0
        %1296 = vmatpush1.msra.mxu0 %v991
        %1297 = vmatprep.subr.mxu0 0.0
        %1298 = vmatpush1.msra.mxu0 %v990
        %1299 = vmatprep.subr.mxu0 0.0
        %1300 = vmatpush1.msra.mxu0 %v989
        %1301 = vmatprep.subr.mxu0 0.0
        %1302 = vmatpush1.msra.mxu0 %v988
        %1303 = vmatprep.subr.mxu0 0.0
        %1304 = vmatpush1.msra.mxu0 %v987
        %1305 = vmatprep.subr.mxu0 0.0
        %1306 = vmatpush1.msra.mxu0 %v986
        %1307 = vmatprep.subr.mxu0 0.0
        %1308 = vmatpush1.msra.mxu0 %v985
        %1309 = vmatprep.subr.mxu0 0.0
        %1310 = vmatpush1.msra.mxu0 %v984
        %1311 = vmatprep.subr.mxu0 0.0
        %1312 = vmatpush1.msra.mxu0 %v983
        %1313 = vmatprep.subr.mxu0 0.0
        %1314 = vmatpush1.msra.mxu0 %v982
        %1315 = vmatprep.subr.mxu0 0.0
        %1316 = vmatpush1.msra.mxu0 %v981
        %1317 = vmatprep.subr.mxu0 0.0
        %1318 = vmatpush1.msra.mxu0 %v980
        %1319 = vmatprep.subr.mxu0 0.0
        %1320 = vmatpush1.msra.mxu0 %v979
        %1321 = vmatprep.subr.mxu0 0.0
        %1322 = vmatpush1.msra.mxu0 %v978
        %1323 = vmatprep.subr.mxu0 0.0
        %1324 = vmatpush1.msra.mxu0 %v977
        %1325 = vmatprep.subr.mxu0 0.0
        %1326 = vmatpush2.msra.mxu0 0.0
        %1327 = vmatprep.subr.mxu0 0.0
        %1328 = vmatpush2.msra.mxu0 0.0
        %1329 = vmatprep.subr.mxu0 0.0
        %1330 = vmatpush2.msra.mxu0 0.0
        %1331 = vmatprep.subr.mxu0 0.0
        %1332 = vmatpush2.msra.mxu0 0.0
        %1333 = vmatprep.subr.mxu0 0.0
        %1334 = vmatpush2.msra.mxu0 0.0
        %1335 = vmatprep.subr.mxu0 0.0
        %1336 = vmatpush2.msra.mxu0 0.0
        %1337 = vmatprep.subr.mxu0 0.0
        %1338 = vmatpush2.msra.mxu0 0.0
        %1339 = vmatprep.subr.mxu0 0.0
        %1340 = vmatpush2.msra.mxu0 0.0
        %1341 = vmatprep.subr.mxu0 0.0
        %1342 = vmatpush2.msra.mxu0 0.0
        %1343 = vmatprep.subr.mxu0 0.0
        %1344 = vmatpush2.msra.mxu0 0.0
        %1345 = vmatprep.subr.mxu0 0.0
        %1346 = vmatpush2.msra.mxu0 0.0
        %1347 = vmatprep.subr.mxu0 0.0
        %1348 = vmatpush2.msra.mxu0 0.0
        %1349 = vmatprep.subr.mxu0 0.0
        %1350 = vmatpush2.msra.mxu0 0.0
        %1351 = vmatprep.subr.mxu0 0.0
        %1352 = vmatpush2.msra.mxu0 0.0
        %1353 = vmatprep.subr.mxu0 0.0
        %1354 = vmatpush2.msra.mxu0 0.0
        %1355 = vmatprep.subr.mxu0 0.0
        %1356 = vmatpush2.msra.mxu0 0.0
        %1357 = vmatprep.mubr.f32.mxu0 0.0
        %1358 = vmatmul.mubr.f32.gmra.mxu0 %v845
        %v1359 = vpop.f32.mrf.mxu0
        %v1360 = vadd.f32 %v1285, %v1359
        %v1361 = vpop.f32.mrf.mxu0
        %1362 = vmatprep.mubr.f32.mxu0 0.0
        %1363 = vmatmul.mubr.f32.gmra.mxu0 %v848
        %v1364 = vpop.f32.mrf.mxu0
        %v1365 = vadd.f32 %v1290, %v1364
        %v1366 = vpop.f32.mrf.mxu0
        %1367 = vdwg.mxu0
        %v1368 = vrot.slane %v1360, 7
        %v1369 = vrot.slane %v1365, 7
        %v1370 = vsel %vm809, %v1368, %v1369
        %v1371 = vsel %vm809, %v1369, %v1368
        %v1372 = vsel %vm818, %v1371, 0.0
        %v1373 = vsel %vm819, %v1370, 0.0
        %v1374 = vrot.slane %v1360, 1
        %v1375 = vrot.slane %v1365, 1
        %v1376 = vsel %vm832, %v1374, %v1375
        %v1377 = vsel %vm832, %v1375, %v1374
        %v1378 = vsel %vm841, %v1376, 0.0
        %v1379 = vsel %vm842, %v1377, 0.0
        %v1380 = vld [vmem:[%s7] sm:$0xff]
        %v1381 = vld [vmem:[%s7 + $0x8] sm:$0xff]
        %v1382 = vld [vmem:[%s7 + $0x10] sm:$0xff]
        %v1383 = vld [vmem:[%s7 + $0x18] sm:$0xff]
        %v1384 = vld [vmem:[%s7 + $0x20] sm:$0xff]
        %v1385 = vld [vmem:[%s7 + $0x28] sm:$0xff]
        %v1386 = vld [vmem:[%s7 + $0x30] sm:$0xff]
        %v1387 = vld [vmem:[%s7 + $0x38] sm:$0xff]
        %v1388 = vld [vmem:[%s7 + $0x40] sm:$0xff]
        %v1389 = vld [vmem:[%s7 + $0x48] sm:$0xff]
        %v1390 = vld [vmem:[%s7 + $0x50] sm:$0xff]
        %v1391 = vld [vmem:[%s7 + $0x58] sm:$0xff]
        %v1392 = vld [vmem:[%s7 + $0x60] sm:$0xff]
        %v1393 = vld [vmem:[%s7 + $0x68] sm:$0xff]
        %v1394 = vld [vmem:[%s7 + $0x70] sm:$0xff]
        %v1395 = vld [vmem:[%s7 + $0x78] sm:$0xff]
        %v1396 = vld [vmem:[%s7 + $0x80] sm:$0xff]
        %v1397 = vld [vmem:[%s7 + $0x88] sm:$0xff]
        %v1398 = vld [vmem:[%s7 + $0x90] sm:$0xff]
        %v1399 = vld [vmem:[%s7 + $0x98] sm:$0xff]
        %v1400 = vld [vmem:[%s7 + $0xa0] sm:$0xff]
        %v1401 = vld [vmem:[%s7 + $0xa8] sm:$0xff]
        %v1402 = vld [vmem:[%s7 + $0xb0] sm:$0xff]
        %v1403 = vld [vmem:[%s7 + $0xb8] sm:$0xff]
        %v1404 = vld [vmem:[%s7 + $0xc0] sm:$0xff]
        %v1405 = vld [vmem:[%s7 + $0xc8] sm:$0xff]
        %v1406 = vld [vmem:[%s7 + $0xd0] sm:$0xff]
        %v1407 = vld [vmem:[%s7 + $0xd8] sm:$0xff]
        %v1408 = vld [vmem:[%s7 + $0xe0] sm:$0xff]
        %v1409 = vld [vmem:[%s7 + $0xe8] sm:$0xff]
        %v1410 = vld [vmem:[%s7 + $0xf0] sm:$0xff]
        %v1411 = vld [vmem:[%s7 + $0xf8] sm:$0xff]
        %v1412 = vld [vmem:[%s7 + $0x100] sm:$0xff]
        %v1413 = vld [vmem:[%s7 + $0x108] sm:$0xff]
        %v1414 = vld [vmem:[%s7 + $0x110] sm:$0xff]
        %v1415 = vld [vmem:[%s7 + $0x118] sm:$0xff]
        %v1416 = vld [vmem:[%s7 + $0x120] sm:$0xff]
        %v1417 = vld [vmem:[%s7 + $0x128] sm:$0xff]
        %v1418 = vld [vmem:[%s7 + $0x130] sm:$0xff]
        %v1419 = vld [vmem:[%s7 + $0x138] sm:$0xff]
        %v1420 = vld [vmem:[%s7 + $0x140] sm:$0xff]
        %v1421 = vld [vmem:[%s7 + $0x148] sm:$0xff]
        %v1422 = vld [vmem:[%s7 + $0x150] sm:$0xff]
        %v1423 = vld [vmem:[%s7 + $0x158] sm:$0xff]
        %v1424 = vld [vmem:[%s7 + $0x160] sm:$0xff]
        %v1425 = vld [vmem:[%s7 + $0x168] sm:$0xff]
        %v1426 = vld [vmem:[%s7 + $0x170] sm:$0xff]
        %v1427 = vld [vmem:[%s7 + $0x178] sm:$0xff]
        %1428 = vmatprep.subr.mxu0 0.0
        %1429 = vmatpush1.msra.mxu0 %v1395
        %1430 = vmatprep.subr.mxu0 0.0
        %1431 = vmatpush1.msra.mxu0 %v1394
        %1432 = vmatprep.subr.mxu0 0.0
        %1433 = vmatpush1.msra.mxu0 %v1393
        %1434 = vmatprep.subr.mxu0 0.0
        %1435 = vmatpush1.msra.mxu0 %v1392
        %1436 = vmatprep.subr.mxu0 0.0
        %1437 = vmatpush1.msra.mxu0 %v1391
        %1438 = vmatprep.subr.mxu0 0.0
        %1439 = vmatpush1.msra.mxu0 %v1390
        %1440 = vmatprep.subr.mxu0 0.0
        %1441 = vmatpush1.msra.mxu0 %v1389
        %1442 = vmatprep.subr.mxu0 0.0
        %1443 = vmatpush1.msra.mxu0 %v1388
        %1444 = vmatprep.subr.mxu0 0.0
        %1445 = vmatpush1.msra.mxu0 %v1387
        %1446 = vmatprep.subr.mxu0 0.0
        %1447 = vmatpush1.msra.mxu0 %v1386
        %1448 = vmatprep.subr.mxu0 0.0
        %1449 = vmatpush1.msra.mxu0 %v1385
        %1450 = vmatprep.subr.mxu0 0.0
        %1451 = vmatpush1.msra.mxu0 %v1384
        %1452 = vmatprep.subr.mxu0 0.0
        %1453 = vmatpush1.msra.mxu0 %v1383
        %1454 = vmatprep.subr.mxu0 0.0
        %1455 = vmatpush1.msra.mxu0 %v1382
        %1456 = vmatprep.subr.mxu0 0.0
        %1457 = vmatpush1.msra.mxu0 %v1381
        %1458 = vmatprep.subr.mxu0 0.0
        %1459 = vmatpush1.msra.mxu0 %v1380
        %1460 = vmatprep.subr.mxu0 0.0
        %1461 = vmatpush2.msra.mxu0 %v1411
        %1462 = vmatprep.subr.mxu0 0.0
        %1463 = vmatpush2.msra.mxu0 %v1410
        %1464 = vmatprep.subr.mxu0 0.0
        %1465 = vmatpush2.msra.mxu0 %v1409
        %1466 = vmatprep.subr.mxu0 0.0
        %1467 = vmatpush2.msra.mxu0 %v1408
        %1468 = vmatprep.subr.mxu0 0.0
        %1469 = vmatpush2.msra.mxu0 %v1407
        %1470 = vmatprep.subr.mxu0 0.0
        %1471 = vmatpush2.msra.mxu0 %v1406
        %1472 = vmatprep.subr.mxu0 0.0
        %1473 = vmatpush2.msra.mxu0 %v1405
        %1474 = vmatprep.subr.mxu0 0.0
        %1475 = vmatpush2.msra.mxu0 %v1404
        %1476 = vmatprep.subr.mxu0 0.0
        %1477 = vmatpush2.msra.mxu0 %v1403
        %1478 = vmatprep.subr.mxu0 0.0
        %1479 = vmatpush2.msra.mxu0 %v1402
        %1480 = vmatprep.subr.mxu0 0.0
        %1481 = vmatpush2.msra.mxu0 %v1401
        %1482 = vmatprep.subr.mxu0 0.0
        %1483 = vmatpush2.msra.mxu0 %v1400
        %1484 = vmatprep.subr.mxu0 0.0
        %1485 = vmatpush2.msra.mxu0 %v1399
        %1486 = vmatprep.subr.mxu0 0.0
        %1487 = vmatpush2.msra.mxu0 %v1398
        %1488 = vmatprep.subr.mxu0 0.0
        %1489 = vmatpush2.msra.mxu0 %v1397
        %1490 = vmatprep.subr.mxu0 0.0
        %1491 = vmatpush2.msra.mxu0 %v1396
        %1492 = vmatprep.mubr.f32.mxu0 %v1360
        %1493 = vmatmul.mubr.f32.gmra.mxu0 %v1372
        %v1494 = vpop.f32.mrf.mxu0
        %v1495 = vadd.f32 0.0, %v1494
        %v1496 = vpop.f32.mrf.mxu0
        %1497 = vmatprep.mubr.f32.mxu0 %v1365
        %1498 = vmatmul.mubr.f32.gmra.mxu0 %v1373
        %v1499 = vpop.f32.mrf.mxu0
        %v1500 = vadd.f32 0.0, %v1499
        %v1501 = vpop.f32.mrf.mxu0
        %1502 = vdwg.mxu0
        %1503 = vmatprep.subr.mxu0 0.0
        %1504 = vmatpush1.msra.mxu0 %v1427
        %1505 = vmatprep.subr.mxu0 0.0
        %1506 = vmatpush1.msra.mxu0 %v1426
        %1507 = vmatprep.subr.mxu0 0.0
        %1508 = vmatpush1.msra.mxu0 %v1425
        %1509 = vmatprep.subr.mxu0 0.0
        %1510 = vmatpush1.msra.mxu0 %v1424
        %1511 = vmatprep.subr.mxu0 0.0
        %1512 = vmatpush1.msra.mxu0 %v1423
        %1513 = vmatprep.subr.mxu0 0.0
        %1514 = vmatpush1.msra.mxu0 %v1422
        %1515 = vmatprep.subr.mxu0 0.0
        %1516 = vmatpush1.msra.mxu0 %v1421
        %1517 = vmatprep.subr.mxu0 0.0
        %1518 = vmatpush1.msra.mxu0 %v1420
        %1519 = vmatprep.subr.mxu0 0.0
        %1520 = vmatpush1.msra.mxu0 %v1419
        %1521 = vmatprep.subr.mxu0 0.0
        %1522 = vmatpush1.msra.mxu0 %v1418
        %1523 = vmatprep.subr.mxu0 0.0
        %1524 = vmatpush1.msra.mxu0 %v1417
        %1525 = vmatprep.subr.mxu0 0.0
        %1526 = vmatpush1.msra.mxu0 %v1416
        %1527 = vmatprep.subr.mxu0 0.0
        %1528 = vmatpush1.msra.mxu0 %v1415
        %1529 = vmatprep.subr.mxu0 0.0
        %1530 = vmatpush1.msra.mxu0 %v1414
        %1531 = vmatprep.subr.mxu0 0.0
        %1532 = vmatpush1.msra.mxu0 %v1413
        %1533 = vmatprep.subr.mxu0 0.0
        %1534 = vmatpush1.msra.mxu0 %v1412
        %1535 = vmatprep.subr.mxu0 0.0
        %1536 = vmatpush2.msra.mxu0 0.0
        %1537 = vmatprep.subr.mxu0 0.0
        %1538 = vmatpush2.msra.mxu0 0.0
        %1539 = vmatprep.subr.mxu0 0.0
        %1540 = vmatpush2.msra.mxu0 0.0
        %1541 = vmatprep.subr.mxu0 0.0
        %1542 = vmatpush2.msra.mxu0 0.0
        %1543 = vmatprep.subr.mxu0 0.0
        %1544 = vmatpush2.msra.mxu0 0.0
        %1545 = vmatprep.subr.mxu0 0.0
        %1546 = vmatpush2.msra.mxu0 0.0
        %1547 = vmatprep.subr.mxu0 0.0
        %1548 = vmatpush2.msra.mxu0 0.0
        %1549 = vmatprep.subr.mxu0 0.0
        %1550 = vmatpush2.msra.mxu0 0.0
        %1551 = vmatprep.subr.mxu0 0.0
        %1552 = vmatpush2.msra.mxu0 0.0
        %1553 = vmatprep.subr.mxu0 0.0
        %1554 = vmatpush2.msra.mxu0 0.0
        %1555 = vmatprep.subr.mxu0 0.0
        %1556 = vmatpush2.msra.mxu0 0.0
        %1557 = vmatprep.subr.mxu0 0.0
        %1558 = vmatpush2.msra.mxu0 0.0
        %1559 = vmatprep.subr.mxu0 0.0
        %1560 = vmatpush2.msra.mxu0 0.0
        %1561 = vmatprep.subr.mxu0 0.0
        %1562 = vmatpush2.msra.mxu0 0.0
        %1563 = vmatprep.subr.mxu0 0.0
        %1564 = vmatpush2.msra.mxu0 0.0
        %1565 = vmatprep.subr.mxu0 0.0
        %1566 = vmatpush2.msra.mxu0 0.0
        %1567 = vmatprep.mubr.f32.mxu0 0.0
        %1568 = vmatmul.mubr.f32.gmra.mxu0 %v1378
        %v1569 = vpop.f32.mrf.mxu0
        %v1570 = vadd.f32 %v1495, %v1569
        %v1571 = vpop.f32.mrf.mxu0
        %1572 = vmatprep.mubr.f32.mxu0 0.0
        %1573 = vmatmul.mubr.f32.gmra.mxu0 %v1379
        %v1574 = vpop.f32.mrf.mxu0
        %v1575 = vadd.f32 %v1500, %v1574
        %v1576 = vpop.f32.mrf.mxu0
        %1577 = vdwg.mxu0
        %v1578 = vrot.slane %v1570, 7
        %v1579 = vrot.slane %v1575, 7
        %v1580 = vsel %vm809, %v1578, %v1579
        %v1581 = vsel %vm809, %v1579, %v1578
        %v1582 = vsel %vm818, %v1581, 0.0
        %v1583 = vsel %vm819, %v1580, 0.0
        %v1584 = vrot.slane %v1570, 1
        %v1585 = vrot.slane %v1575, 1
        %v1586 = vsel %vm832, %v1584, %v1585
        %v1587 = vsel %vm832, %v1585, %v1584
        %v1588 = vsel %vm841, %v1586, 0.0
        %v1589 = vsel %vm842, %v1587, 0.0
        %v1590 = vld [vmem:[%s8] sm:$0xff]
        %v1591 = vld [vmem:[%s8 + $0x8] sm:$0xff]
        %v1592 = vld [vmem:[%s8 + $0x10] sm:$0xff]
        %v1593 = vld [vmem:[%s8 + $0x18] sm:$0xff]
        %v1594 = vld [vmem:[%s8 + $0x20] sm:$0xff]
        %v1595 = vld [vmem:[%s8 + $0x28] sm:$0xff]
        %v1596 = vld [vmem:[%s8 + $0x30] sm:$0xff]
        %v1597 = vld [vmem:[%s8 + $0x38] sm:$0xff]
        %v1598 = vld [vmem:[%s8 + $0x40] sm:$0xff]
        %v1599 = vld [vmem:[%s8 + $0x48] sm:$0xff]
        %v1600 = vld [vmem:[%s8 + $0x50] sm:$0xff]
        %v1601 = vld [vmem:[%s8 + $0x58] sm:$0xff]
        %v1602 = vld [vmem:[%s8 + $0x60] sm:$0xff]
        %v1603 = vld [vmem:[%s8 + $0x68] sm:$0xff]
        %v1604 = vld [vmem:[%s8 + $0x70] sm:$0xff]
        %v1605 = vld [vmem:[%s8 + $0x78] sm:$0xff]
        %v1606 = vld [vmem:[%s8 + $0x80] sm:$0xff]
        %v1607 = vld [vmem:[%s8 + $0x88] sm:$0xff]
        %v1608 = vld [vmem:[%s8 + $0x90] sm:$0xff]
        %v1609 = vld [vmem:[%s8 + $0x98] sm:$0xff]
        %v1610 = vld [vmem:[%s8 + $0xa0] sm:$0xff]
        %v1611 = vld [vmem:[%s8 + $0xa8] sm:$0xff]
        %v1612 = vld [vmem:[%s8 + $0xb0] sm:$0xff]
        %v1613 = vld [vmem:[%s8 + $0xb8] sm:$0xff]
        %v1614 = vld [vmem:[%s8 + $0xc0] sm:$0xff]
        %v1615 = vld [vmem:[%s8 + $0xc8] sm:$0xff]
        %v1616 = vld [vmem:[%s8 + $0xd0] sm:$0xff]
        %v1617 = vld [vmem:[%s8 + $0xd8] sm:$0xff]
        %v1618 = vld [vmem:[%s8 + $0xe0] sm:$0xff]
        %v1619 = vld [vmem:[%s8 + $0xe8] sm:$0xff]
        %v1620 = vld [vmem:[%s8 + $0xf0] sm:$0xff]
        %v1621 = vld [vmem:[%s8 + $0xf8] sm:$0xff]
        %v1622 = vld [vmem:[%s8 + $0x100] sm:$0xff]
        %v1623 = vld [vmem:[%s8 + $0x108] sm:$0xff]
        %v1624 = vld [vmem:[%s8 + $0x110] sm:$0xff]
        %v1625 = vld [vmem:[%s8 + $0x118] sm:$0xff]
        %v1626 = vld [vmem:[%s8 + $0x120] sm:$0xff]
        %v1627 = vld [vmem:[%s8 + $0x128] sm:$0xff]
        %v1628 = vld [vmem:[%s8 + $0x130] sm:$0xff]
        %v1629 = vld [vmem:[%s8 + $0x138] sm:$0xff]
        %v1630 = vld [vmem:[%s8 + $0x140] sm:$0xff]
        %v1631 = vld [vmem:[%s8 + $0x148] sm:$0xff]
        %v1632 = vld [vmem:[%s8 + $0x150] sm:$0xff]
        %v1633 = vld [vmem:[%s8 + $0x158] sm:$0xff]
        %v1634 = vld [vmem:[%s8 + $0x160] sm:$0xff]
        %v1635 = vld [vmem:[%s8 + $0x168] sm:$0xff]
        %v1636 = vld [vmem:[%s8 + $0x170] sm:$0xff]
        %v1637 = vld [vmem:[%s8 + $0x178] sm:$0xff]
        %1638 = vmatprep.subr.mxu0 0.0
        %1639 = vmatpush1.msra.mxu0 %v1605
        %1640 = vmatprep.subr.mxu0 0.0
        %1641 = vmatpush1.msra.mxu0 %v1604
        %1642 = vmatprep.subr.mxu0 0.0
        %1643 = vmatpush1.msra.mxu0 %v1603
        %1644 = vmatprep.subr.mxu0 0.0
        %1645 = vmatpush1.msra.mxu0 %v1602
        %1646 = vmatprep.subr.mxu0 0.0
        %1647 = vmatpush1.msra.mxu0 %v1601
        %1648 = vmatprep.subr.mxu0 0.0
        %1649 = vmatpush1.msra.mxu0 %v1600
        %1650 = vmatprep.subr.mxu0 0.0
        %1651 = vmatpush1.msra.mxu0 %v1599
        %1652 = vmatprep.subr.mxu0 0.0
        %1653 = vmatpush1.msra.mxu0 %v1598
        %1654 = vmatprep.subr.mxu0 0.0
        %1655 = vmatpush1.msra.mxu0 %v1597
        %1656 = vmatprep.subr.mxu0 0.0
        %1657 = vmatpush1.msra.mxu0 %v1596
        %1658 = vmatprep.subr.mxu0 0.0
        %1659 = vmatpush1.msra.mxu0 %v1595
        %1660 = vmatprep.subr.mxu0 0.0
        %1661 = vmatpush1.msra.mxu0 %v1594
        %1662 = vmatprep.subr.mxu0 0.0
        %1663 = vmatpush1.msra.mxu0 %v1593
        %1664 = vmatprep.subr.mxu0 0.0
        %1665 = vmatpush1.msra.mxu0 %v1592
        %1666 = vmatprep.subr.mxu0 0.0
        %1667 = vmatpush1.msra.mxu0 %v1591
        %1668 = vmatprep.subr.mxu0 0.0
        %1669 = vmatpush1.msra.mxu0 %v1590
        %1670 = vmatprep.subr.mxu0 0.0
        %1671 = vmatpush2.msra.mxu0 %v1621
        %1672 = vmatprep.subr.mxu0 0.0
        %1673 = vmatpush2.msra.mxu0 %v1620
        %1674 = vmatprep.subr.mxu0 0.0
        %1675 = vmatpush2.msra.mxu0 %v1619
        %1676 = vmatprep.subr.mxu0 0.0
        %1677 = vmatpush2.msra.mxu0 %v1618
        %1678 = vmatprep.subr.mxu0 0.0
        %1679 = vmatpush2.msra.mxu0 %v1617
        %1680 = vmatprep.subr.mxu0 0.0
        %1681 = vmatpush2.msra.mxu0 %v1616
        %1682 = vmatprep.subr.mxu0 0.0
        %1683 = vmatpush2.msra.mxu0 %v1615
        %1684 = vmatprep.subr.mxu0 0.0
        %1685 = vmatpush2.msra.mxu0 %v1614
        %1686 = vmatprep.subr.mxu0 0.0
        %1687 = vmatpush2.msra.mxu0 %v1613
        %1688 = vmatprep.subr.mxu0 0.0
        %1689 = vmatpush2.msra.mxu0 %v1612
        %1690 = vmatprep.subr.mxu0 0.0
        %1691 = vmatpush2.msra.mxu0 %v1611
        %1692 = vmatprep.subr.mxu0 0.0
        %1693 = vmatpush2.msra.mxu0 %v1610
        %1694 = vmatprep.subr.mxu0 0.0
        %1695 = vmatpush2.msra.mxu0 %v1609
        %1696 = vmatprep.subr.mxu0 0.0
        %1697 = vmatpush2.msra.mxu0 %v1608
        %1698 = vmatprep.subr.mxu0 0.0
        %1699 = vmatpush2.msra.mxu0 %v1607
        %1700 = vmatprep.subr.mxu0 0.0
        %1701 = vmatpush2.msra.mxu0 %v1606
        %1702 = vmatprep.mubr.f32.mxu0 %v1570
        %1703 = vmatmul.mubr.f32.gmra.mxu0 %v1582
        %v1704 = vpop.f32.mrf.mxu0
        %v1705 = vadd.f32 0.0, %v1704
        %v1706 = vpop.f32.mrf.mxu0
        %1707 = vmatprep.mubr.f32.mxu0 %v1575
        %1708 = vmatmul.mubr.f32.gmra.mxu0 %v1583
        %v1709 = vpop.f32.mrf.mxu0
        %v1710 = vadd.f32 0.0, %v1709
        %v1711 = vpop.f32.mrf.mxu0
        %1712 = vdwg.mxu0
        %1713 = vmatprep.subr.mxu0 0.0
        %1714 = vmatpush1.msra.mxu0 %v1637
        %1715 = vmatprep.subr.mxu0 0.0
        %1716 = vmatpush1.msra.mxu0 %v1636
        %1717 = vmatprep.subr.mxu0 0.0
        %1718 = vmatpush1.msra.mxu0 %v1635
        %1719 = vmatprep.subr.mxu0 0.0
        %1720 = vmatpush1.msra.mxu0 %v1634
        %1721 = vmatprep.subr.mxu0 0.0
        %1722 = vmatpush1.msra.mxu0 %v1633
        %1723 = vmatprep.subr.mxu0 0.0
        %1724 = vmatpush1.msra.mxu0 %v1632
        %1725 = vmatprep.subr.mxu0 0.0
        %1726 = vmatpush1.msra.mxu0 %v1631
        %1727 = vmatprep.subr.mxu0 0.0
        %1728 = vmatpush1.msra.mxu0 %v1630
        %1729 = vmatprep.subr.mxu0 0.0
        %1730 = vmatpush1.msra.mxu0 %v1629
        %1731 = vmatprep.subr.mxu0 0.0
        %1732 = vmatpush1.msra.mxu0 %v1628
        %1733 = vmatprep.subr.mxu0 0.0
        %1734 = vmatpush1.msra.mxu0 %v1627
        %1735 = vmatprep.subr.mxu0 0.0
        %1736 = vmatpush1.msra.mxu0 %v1626
        %1737 = vmatprep.subr.mxu0 0.0
        %1738 = vmatpush1.msra.mxu0 %v1625
        %1739 = vmatprep.subr.mxu0 0.0
        %1740 = vmatpush1.msra.mxu0 %v1624
        %1741 = vmatprep.subr.mxu0 0.0
        %1742 = vmatpush1.msra.mxu0 %v1623
        %1743 = vmatprep.subr.mxu0 0.0
        %1744 = vmatpush1.msra.mxu0 %v1622
        %1745 = vmatprep.subr.mxu0 0.0
        %1746 = vmatpush2.msra.mxu0 0.0
        %1747 = vmatprep.subr.mxu0 0.0
        %1748 = vmatpush2.msra.mxu0 0.0
        %1749 = vmatprep.subr.mxu0 0.0
        %1750 = vmatpush2.msra.mxu0 0.0
        %1751 = vmatprep.subr.mxu0 0.0
        %1752 = vmatpush2.msra.mxu0 0.0
        %1753 = vmatprep.subr.mxu0 0.0
        %1754 = vmatpush2.msra.mxu0 0.0
        %1755 = vmatprep.subr.mxu0 0.0
        %1756 = vmatpush2.msra.mxu0 0.0
        %1757 = vmatprep.subr.mxu0 0.0
        %1758 = vmatpush2.msra.mxu0 0.0
        %1759 = vmatprep.subr.mxu0 0.0
        %1760 = vmatpush2.msra.mxu0 0.0
        %1761 = vmatprep.subr.mxu0 0.0
        %1762 = vmatpush2.msra.mxu0 0.0
        %1763 = vmatprep.subr.mxu0 0.0
        %1764 = vmatpush2.msra.mxu0 0.0
        %1765 = vmatprep.subr.mxu0 0.0
        %1766 = vmatpush2.msra.mxu0 0.0
        %1767 = vmatprep.subr.mxu0 0.0
        %1768 = vmatpush2.msra.mxu0 0.0
        %1769 = vmatprep.subr.mxu0 0.0
        %1770 = vmatpush2.msra.mxu0 0.0
        %1771 = vmatprep.subr.mxu0 0.0
        %1772 = vmatpush2.msra.mxu0 0.0
        %1773 = vmatprep.subr.mxu0 0.0
        %1774 = vmatpush2.msra.mxu0 0.0
        %1775 = vmatprep.subr.mxu0 0.0
        %1776 = vmatpush2.msra.mxu0 0.0
        %1777 = vmatprep.mubr.f32.mxu0 0.0
        %1778 = vmatmul.mubr.f32.gmra.mxu0 %v1588
        %v1779 = vpop.f32.mrf.mxu0
        %v1780 = vadd.f32 %v1705, %v1779
        %v1781 = vpop.f32.mrf.mxu0
        %1782 = vmatprep.mubr.f32.mxu0 0.0
        %1783 = vmatmul.mubr.f32.gmra.mxu0 %v1589
        %v1784 = vpop.f32.mrf.mxu0
        %v1785 = vadd.f32 %v1710, %v1784
        %v1786 = vpop.f32.mrf.mxu0
        %1787 = vdwg.mxu0
        %vm1788 = vcmask 64512
        %1789 = vst.msk [vmem:[%s476] sm:$0xff] %vm1788, %v1780
        %1790 = vst.msk [vmem:[%s476 + $0x8] sm:$0xff] %vm1788, %v1785
        %s1791 = smul.u32 2, %s28
        %p1792 = scmp.lt.s32.totalorder %s1791, 3
        %s1793 = scalar_select %p1792, %s1791, 3
        %s1794 = smul.addr %s1793, 8
        %s1795 = scalar_lea.vmem %s9, %s1794
        // Predicated region
        $region81: #{tpu_custom_call.1} parent=55 // pred_check
          %p1796 = pneg %p250
        $region82: #{tpu_custom_call.1} parent=55 // pred_check_branch
          %1798 = sbr.rel (%p1796) target = $region84
        $region83: #{tpu_custom_call.1} parent=55 // pred_region
          %s1799 = smul.u32 2, %s28
        $region84: #{tpu_custom_call.1} parent=55 // pred_fallthru
          _
      $region56: #{tpu_custom_call.1} parent=5 // pred_fallthru
        _
      %p1800 = scmp.le.s32.totalorder 2, %s23
      // Predicated region
      $region85: #{tpu_custom_call.1} parent=5 // pred_check
        %p1801 = pneg %p1800
      $region86: #{tpu_custom_call.1} parent=5 // pred_check_branch
        %1803 = sbr.rel (%p1801) target = $region88
      $region87: #{tpu_custom_call.1} parent=5 // pred_region
        %s1804 = ssub.s32 %s23, 2
        // Predicated region
        $region89: #{tpu_custom_call.1} parent=87 // pred_check
          %p1805 = pneg %p256
        $region90: #{tpu_custom_call.1} parent=87 // pred_check_branch
          %1807 = sbr.rel (%p1805) target = $region92
        $region91: #{tpu_custom_call.1} parent=87 // pred_region
          %s1808 = smul.u32 2, %s29
          %p1809 = scmp.lt.s32.totalorder %s1808, 3
          %s1810 = scalar_select %p1809, %s1808, 3
          %s1811 = smul.addr %s1810, 8
          %s1812 = scalar_lea.vmem %s9, %s1811
        $region92: #{tpu_custom_call.1} parent=87 // pred_fallthru
          _
      $region88: #{tpu_custom_call.1} parent=5 // pred_fallthru
        _
    $region6: #{tpu_custom_call.1} parent=1 // loop_footer
      %s27 = sadd.s32 1, %s23
    $region7: #{tpu_custom_call.1} parent=1 // loop_footer_branch
      %22 = sbr.rel target = $region3
    $region8: #{tpu_custom_call.1} parent=1 // loop_exit
      _
    %1813 = vsyncpa [#allocation3], 1
    %s1814 = scalar_lea.sflag [#allocation3], 1
    %1815 = vsyncpa %s1814, 1
    %1816 = vsyncpa [#allocation5], 1
    %s1817 = scalar_lea.sflag [#allocation5], 1
    %1818 = vsyncpa %s1817, 1
    %1819 = vsyncpa [#allocation8], 1
    %1820 = vsyncpa [#allocation11], 1

</llo_original>
